<compile_context>
chip_gen: v5e
topology: v5e:2x2
jax: 0.10.0
libtpu: 0.0.40
codegen_flags: <defaults>
</compile_context>

<pallas_src>
import math

import jax
import jax.numpy as jnp
from jax.experimental import pallas as pl
from jax.experimental.pallas import tpu as pltpu

# ---- model hyper-parameters (small, consistent with the module) -------------
D_MODEL = 32
NUM_HEADS = 4
D_HEAD = D_MODEL // NUM_HEADS
D_FF = 64
LN_EPS = 1e-5
ATTN_SCALE = 1.0 / math.sqrt(D_HEAD)


# ============================ in-kernel helpers ===============================
def _softmax_last(s):
    s = s - jnp.max(s, axis=-1, keepdims=True)
    e = jnp.exp(s)
    return e * pl.reciprocal(jnp.sum(e, axis=-1, keepdims=True), approx=True)


def _mha(q_src, kv_src, w, b, attn_scratch, *, self_attn):
    """Fused multi-head attention.

    q_src: (T, D), kv_src: (S, D) f32 values.
    w: (D, 4D) packed [Wq|Wk|Wv|Wo]; b: (1, 4D) packed [bq|bk|bv|bo].
    attn_scratch: VMEM ref (T, D) used to assemble lane-packed head outputs.
    Returns (T, D) f32.
    """
    # One wide lane-dense projection; packed bias folded in once.  Columns:
    # [0:D)=Q, [D:2D)=K, [2D:3D)=V, [3D:4D)=ignored (x @ Wo byproduct).
    qkv_q = jnp.dot(q_src, w, preferred_element_type=jnp.float32) + b        # (T, 4D)
    if self_attn:
        qkv_kv = qkv_q
    else:
        qkv_kv = jnp.dot(kv_src, w, preferred_element_type=jnp.float32) + b  # (S, 4D)

    # Split heads with static lane slices; batch heads in the einsum leading dim.
    q = jnp.stack([qkv_q[:, h * D_HEAD:(h + 1) * D_HEAD]
                   for h in range(NUM_HEADS)], axis=0)                        # (H,T,dh)
    k = jnp.stack([qkv_kv[:, D_MODEL + h * D_HEAD:D_MODEL + (h + 1) * D_HEAD]
                   for h in range(NUM_HEADS)], axis=0)                        # (H,S,dh)
    v = jnp.stack([qkv_kv[:, 2 * D_MODEL + h * D_HEAD:2 * D_MODEL + (h + 1) * D_HEAD]
                   for h in range(NUM_HEADS)], axis=0)                        # (H,S,dh)

    s = jnp.einsum("htd,hsd->hts", q, k,
                   preferred_element_type=jnp.float32) * ATTN_SCALE           # (H,T,S)
    p = _softmax_last(s)
    o = jnp.einsum("hts,hsd->htd", p, v,
                   preferred_element_type=jnp.float32)                        # (H,T,dh)

    # Assemble lane-packed (T, D) head outputs through VMEM scratch, then apply
    # the full W_O (and its bias) in ONE matmul.
    for h in range(NUM_HEADS):
        attn_scratch[:, h * D_HEAD:(h + 1) * D_HEAD] = o[h]
    wo = w[:, 3 * D_MODEL:4 * D_MODEL]                                        # (D, D)
    bo = b[:, 3 * D_MODEL:4 * D_MODEL]                                        # (1, D)
    return jnp.dot(attn_scratch[...], wo, preferred_element_type=jnp.float32) + bo


def _add_ln(x, y, gamma, beta):
    """LayerNorm(x + y); rows on sublanes, d_model on lanes."""
    z = x + y
    mu = jnp.mean(z, axis=-1, keepdims=True)
    var = jnp.mean((z - mu) ** 2, axis=-1, keepdims=True)
    return (z - mu) * jax.lax.rsqrt(var + LN_EPS) * gamma + beta


# =============================== fused kernel =================================
def decoder_layer_kernel(x_ref, enc_ref,
                         wsa_ref, bsa_ref,         # self-attn packed [Wq|Wk|Wv|Wo]
                         wca_ref, bca_ref,         # cross-attn packed
                         w1_ref, b1_ref, w2_ref, b2_ref,   # feed-forward
                         ln_ref,                   # (6, D): [g1,b1,g2,b2,g3,b3]
                         out_ref,
                         attn_scratch):            # VMEM (T, D) scratch
    x2 = x_ref[0].astype(jnp.float32)      # (T, D)
    enc2 = enc_ref[0].astype(jnp.float32)  # (S, D)
    lnp = ln_ref[...]

    # self-attention + residual + norm1
    sa = _mha(x2, x2, wsa_ref[...], bsa_ref[...], attn_scratch, self_attn=True)
    x2 = _add_ln(x2, sa, lnp[0:1], lnp[1:2])

    # cross-attention + residual + norm2
    ca = _mha(x2, enc2, wca_ref[...], bca_ref[...], attn_scratch, self_attn=False)
    x2 = _add_ln(x2, ca, lnp[2:3], lnp[3:4])

    # feed-forward + residual + norm3
    hdn = jnp.dot(x2, w1_ref[...], preferred_element_type=jnp.float32) + b1_ref[...]
    hdn = jnp.maximum(hdn, 0.0)
    ff = jnp.dot(hdn, w2_ref[...], preferred_element_type=jnp.float32) + b2_ref[...]
    x2 = _add_ln(x2, ff, lnp[4:5], lnp[5:6])

    out_ref[0] = x2.astype(out_ref.dtype)


# ========================= wrapper / weight packing ===========================
def decoder_layer(x, enc_output, params):
    B, T, D = x.shape
    S = enc_output.shape[1]

    def pack_attn(p):
        w = jnp.concatenate([p["wq"], p["wk"], p["wv"], p["wo"]], axis=1)  # (D, 4D)
        b = jnp.concatenate([p["bq"], p["bk"], p["bv"], p["bo"]], axis=1)  # (1, 4D)
        return w, b

    w_sa, b_sa = pack_attn(params["self_attn"])
    w_ca, b_ca = pack_attn(params["cross_attn"])
    ln_pack = jnp.concatenate(
        [params["ln1"]["gamma"], params["ln1"]["beta"],
         params["ln2"]["gamma"], params["ln2"]["beta"],
         params["ln3"]["gamma"], params["ln3"]["beta"]], axis=0)           # (6, D)

    w1, b1 = params["ffn"]["w1"], params["ffn"]["b1"]
    w2, b2 = params["ffn"]["w2"], params["ffn"]["b2"]

    def whole(shape):
        return pl.BlockSpec(shape, lambda bi, _s=shape: tuple(0 for _ in _s))

    in_specs = [
        pl.BlockSpec((1, T, D), lambda bi: (bi, 0, 0)),   # x
        pl.BlockSpec((1, S, D), lambda bi: (bi, 0, 0)),   # enc_output
        whole(w_sa.shape), whole(b_sa.shape),
        whole(w_ca.shape), whole(b_ca.shape),
        whole(w1.shape), whole(b1.shape), whole(w2.shape), whole(b2.shape),
        whole(ln_pack.shape),
    ]
    out_specs = pl.BlockSpec((1, T, D), lambda bi: (bi, 0, 0))

    return pl.pallas_call(
        decoder_layer_kernel,
        grid=(B,),
        in_specs=in_specs,
        out_specs=out_specs,
        out_shape=jax.ShapeDtypeStruct((B, T, D), x.dtype),
        scratch_shapes=[pltpu.VMEM((T, D), jnp.float32)],
        compiler_params=pltpu.CompilerParams(
            dimension_semantics=("parallel",)),
    )(x, enc_output, w_sa, b_sa, w_ca, b_ca, w1, b1, w2, b2, ln_pack)


# ============================== parameter init ================================
def _linear(key, fan_in, fan_out):
    k1, k2 = jax.random.split(key)
    bound = 1.0 / math.sqrt(fan_in)
    w = jax.random.uniform(k1, (fan_in, fan_out), jnp.float32, -bound, bound)
    b = jax.random.uniform(k2, (1, fan_out), jnp.float32, -bound, bound)
    return w, b


def init_params(key, d_model=D_MODEL, d_ff=D_FF):
    keys = jax.random.split(key, 4)

    def attn_params(k4):
        ks = jax.random.split(k4, 4)
        wq, bq = _linear(ks[0], d_model, d_model)
        wk, bk = _linear(ks[1], d_model, d_model)
        wv, bv = _linear(ks[2], d_model, d_model)
        wo, bo = _linear(ks[3], d_model, d_model)
        return dict(wq=wq, bq=bq, wk=wk, bk=bk, wv=wv, bv=bv, wo=wo, bo=bo)

    w1, b1 = _linear(keys[2], d_model, d_ff)
    w2, b2 = _linear(keys[3], d_ff, d_model)

    ln = lambda: dict(gamma=jnp.ones((1, d_model), jnp.float32),
                      beta=jnp.zeros((1, d_model), jnp.float32))

    return dict(
        self_attn=attn_params(keys[0]),
        cross_attn=attn_params(keys[1]),
        ffn=dict(w1=w1, b1=b1, w2=w2, b2=b2),
        ln1=ln(), ln2=ln(), ln3=ln(),
    )


# ============================ pure-JAX reference ==============================
def _ref_mha(q_in, kv_in, p):
    B, T, D = q_in.shape
    S = kv_in.shape[1]
    hp = jax.lax.Precision.HIGHEST
    q = jnp.matmul(q_in, p["wq"], precision=hp) + p["bq"][0]
    k = jnp.matmul(kv_in, p["wk"], precision=hp) + p["bk"][0]
    v = jnp.matmul(kv_in, p["wv"], precision=hp) + p["bv"][0]
    q = q.reshape(B, T, NUM_HEADS, D_HEAD).transpose(0, 2, 1, 3)
    k = k.reshape(B, S, NUM_HEADS, D_HEAD).transpose(0, 2, 1, 3)
    v = v.reshape(B, S, NUM_HEADS, D_HEAD).transpose(0, 2, 1, 3)
    s = jnp.einsum("bhtd,bhsd->bhts", q, k, precision=hp) / math.sqrt(D_HEAD)
    p_attn = jax.nn.softmax(s, axis=-1)
    o = jnp.einsum("bhts,bhsd->bhtd", p_attn, v, precision=hp)
    o = o.transpose(0, 2, 1, 3).reshape(B, T, D)
    return jnp.matmul(o, p["wo"], precision=hp) + p["bo"][0]


def _ref_add_ln(x, y, p):
    z = x + y
    mu = jnp.mean(z, axis=-1, keepdims=True)
    var = jnp.mean((z - mu) ** 2, axis=-1, keepdims=True)
    return (z - mu) / jnp.sqrt(var + LN_EPS) * p["gamma"][0] + p["beta"][0]


def _ref_decoder(x, enc, params):
    hp = jax.lax.Precision.HIGHEST
    x = _ref_add_ln(x, _ref_mha(x, x, params["self_attn"]), params["ln1"])
    x = _ref_add_ln(x, _ref_mha(x, enc, params["cross_attn"]), params["ln2"])
    h = jnp.maximum(jnp.matmul(x, params["ffn"]["w1"], precision=hp)
                    + params["ffn"]["b1"][0], 0.0)
    ff = jnp.matmul(h, params["ffn"]["w2"], precision=hp) + params["ffn"]["b2"][0]
    return _ref_add_ln(x, ff, params["ln3"])


# ==================================== main ====================================
if __name__ == "__main__":
    key = jax.random.PRNGKey(0)
    k_par, k_x, k_enc = jax.random.split(key, 3)

    B, T, S = 2, 8, 8
    params = init_params(k_par)
    x = jax.random.normal(k_x, (B, T, D_MODEL), jnp.float32)
    enc_output = jax.random.normal(k_enc, (B, S, D_MODEL), jnp.float32)

    out = jax.jit(decoder_layer)(x, enc_output, params)
    out = jax.block_until_ready(out)

    assert out.shape == (B, T, D_MODEL), out.shape
    assert bool(jnp.all(jnp.isfinite(out)))

    ref = _ref_decoder(x, enc_output, params)
    assert bool(jnp.allclose(out, ref, atol=2e-2, rtol=2e-2)), (
        float(jnp.max(jnp.abs(out - ref))))

    print("KERNEL_OK")
</pallas_src>

<mosaic_0001>
module attributes {stable_mosaic.version = 11 : i64} {
  func.func @decoder_layer_kernel(%arg0: i32, %arg1: memref<1x8x32xf32, #tpu.memory_space<vmem>>, %arg2: memref<1x8x32xf32, #tpu.memory_space<vmem>>, %arg3: memref<32x128xf32, #tpu.memory_space<vmem>>, %arg4: memref<1x128xf32, #tpu.memory_space<vmem>>, %arg5: memref<32x128xf32, #tpu.memory_space<vmem>>, %arg6: memref<1x128xf32, #tpu.memory_space<vmem>>, %arg7: memref<32x64xf32, #tpu.memory_space<vmem>>, %arg8: memref<1x64xf32, #tpu.memory_space<vmem>>, %arg9: memref<64x32xf32, #tpu.memory_space<vmem>>, %arg10: memref<1x32xf32, #tpu.memory_space<vmem>>, %arg11: memref<6x32xf32, #tpu.memory_space<vmem>>, %arg12: memref<1x8x32xf32, #tpu.memory_space<vmem>>, %arg13: memref<8x32xf32, #tpu.memory_space<vmem>>) attributes {dimension_semantics = [#tpu.dimension_semantics<parallel>], iteration_bounds = array<i64: 2>, scalar_prefetch = 0 : i64, scratch_operands = 1 : i64, tpu.core_type = #tpu.core_type<tc>, window_params = [{transform_indices = @transform_0, window_bounds = array<i64: 1, 8, 32>}, {transform_indices = @transform_1, window_bounds = array<i64: 1, 8, 32>}, {pipeline_mode = #tpu.pipeline_mode<synchronous>, transform_indices = @transform_2, window_bounds = array<i64: 32, 128>}, {pipeline_mode = #tpu.pipeline_mode<synchronous>, transform_indices = @transform_3, window_bounds = array<i64: 1, 128>}, {pipeline_mode = #tpu.pipeline_mode<synchronous>, transform_indices = @transform_4, window_bounds = array<i64: 32, 128>}, {pipeline_mode = #tpu.pipeline_mode<synchronous>, transform_indices = @transform_5, window_bounds = array<i64: 1, 128>}, {pipeline_mode = #tpu.pipeline_mode<synchronous>, transform_indices = @transform_6, window_bounds = array<i64: 32, 64>}, {pipeline_mode = #tpu.pipeline_mode<synchronous>, transform_indices = @transform_7, window_bounds = array<i64: 1, 64>}, {pipeline_mode = #tpu.pipeline_mode<synchronous>, transform_indices = @transform_8, window_bounds = array<i64: 64, 32>}, {pipeline_mode = #tpu.pipeline_mode<synchronous>, transform_indices = @transform_9, window_bounds = array<i64: 1, 32>}, {pipeline_mode = #tpu.pipeline_mode<synchronous>, transform_indices = @transform_10, window_bounds = array<i64: 6, 32>}, {transform_indices = @transform_11, window_bounds = array<i64: 1, 8, 32>}]} {
    %c0 = arith.constant 0 : index
    %c0_0 = arith.constant 0 : index
    %c0_1 = arith.constant 0 : index
    %0 = vector.load %arg1[%c0, %c0_0, %c0_1] : memref<1x8x32xf32, #tpu.memory_space<vmem>>, vector<1x8x32xf32>
    %1 = vector.shape_cast %0 : vector<1x8x32xf32> to vector<8x32xf32>
    %c0_2 = arith.constant 0 : index
    %c0_3 = arith.constant 0 : index
    %c0_4 = arith.constant 0 : index
    %2 = vector.load %arg2[%c0_2, %c0_3, %c0_4] : memref<1x8x32xf32, #tpu.memory_space<vmem>>, vector<1x8x32xf32>
    %3 = vector.shape_cast %2 : vector<1x8x32xf32> to vector<8x32xf32>
    %c0_5 = arith.constant 0 : index
    %c0_6 = arith.constant 0 : index
    %4 = vector.load %arg11[%c0_5, %c0_6] : memref<6x32xf32, #tpu.memory_space<vmem>>, vector<6x32xf32>
    %c0_7 = arith.constant 0 : index
    %c0_8 = arith.constant 0 : index
    %5 = vector.load %arg3[%c0_7, %c0_8] : memref<32x128xf32, #tpu.memory_space<vmem>>, vector<32x128xf32>
    %c0_9 = arith.constant 0 : index
    %c0_10 = arith.constant 0 : index
    %6 = vector.load %arg4[%c0_9, %c0_10] : memref<1x128xf32, #tpu.memory_space<vmem>>, vector<1x128xf32>
    %cst = arith.constant dense<0.000000e+00> : vector<8x128xf32>
    %7 = tpu.matmul %1, %5, %cst {dimension_numbers = #tpu.dot_dimension_numbers<[1], [0], [0], [1], [0, 0, 1, 1], [], []>} : vector<8x32xf32>, vector<32x128xf32>, vector<8x128xf32> -> vector<8x128xf32>
    %8 = vector.broadcast %6 : vector<1x128xf32> to vector<8x128xf32>
    %9 = arith.addf %7, %8 : vector<8x128xf32>
    %10 = vector.extract_strided_slice %9 {offsets = [0, 0], sizes = [8, 8], strides = [1, 1]} : vector<8x128xf32> to vector<8x8xf32>
    %11 = vector.extract_strided_slice %9 {offsets = [0, 8], sizes = [8, 8], strides = [1, 1]} : vector<8x128xf32> to vector<8x8xf32>
    %12 = vector.extract_strided_slice %9 {offsets = [0, 16], sizes = [8, 8], strides = [1, 1]} : vector<8x128xf32> to vector<8x8xf32>
    %13 = vector.extract_strided_slice %9 {offsets = [0, 24], sizes = [8, 8], strides = [1, 1]} : vector<8x128xf32> to vector<8x8xf32>
    %14 = vector.shape_cast %10 : vector<8x8xf32> to vector<1x8x8xf32>
    %15 = vector.shape_cast %11 : vector<8x8xf32> to vector<1x8x8xf32>
    %16 = vector.shape_cast %12 : vector<8x8xf32> to vector<1x8x8xf32>
    %17 = vector.shape_cast %13 : vector<8x8xf32> to vector<1x8x8xf32>
    %18 = tpu.concatenate %14, %15, %16, %17 in 0 : vector<1x8x8xf32>, vector<1x8x8xf32>, vector<1x8x8xf32>, vector<1x8x8xf32> -> vector<4x8x8xf32>
    %19 = vector.extract_strided_slice %9 {offsets = [0, 32], sizes = [8, 8], strides = [1, 1]} : vector<8x128xf32> to vector<8x8xf32>
    %20 = vector.extract_strided_slice %9 {offsets = [0, 40], sizes = [8, 8], strides = [1, 1]} : vector<8x128xf32> to vector<8x8xf32>
    %21 = vector.extract_strided_slice %9 {offsets = [0, 48], sizes = [8, 8], strides = [1, 1]} : vector<8x128xf32> to vector<8x8xf32>
    %22 = vector.extract_strided_slice %9 {offsets = [0, 56], sizes = [8, 8], strides = [1, 1]} : vector<8x128xf32> to vector<8x8xf32>
    %23 = vector.shape_cast %19 : vector<8x8xf32> to vector<1x8x8xf32>
    %24 = vector.shape_cast %20 : vector<8x8xf32> to vector<1x8x8xf32>
    %25 = vector.shape_cast %21 : vector<8x8xf32> to vector<1x8x8xf32>
    %26 = vector.shape_cast %22 : vector<8x8xf32> to vector<1x8x8xf32>
    %27 = tpu.concatenate %23, %24, %25, %26 in 0 : vector<1x8x8xf32>, vector<1x8x8xf32>, vector<1x8x8xf32>, vector<1x8x8xf32> -> vector<4x8x8xf32>
    %28 = vector.extract_strided_slice %9 {offsets = [0, 64], sizes = [8, 8], strides = [1, 1]} : vector<8x128xf32> to vector<8x8xf32>
    %29 = vector.extract_strided_slice %9 {offsets = [0, 72], sizes = [8, 8], strides = [1, 1]} : vector<8x128xf32> to vector<8x8xf32>
    %30 = vector.extract_strided_slice %9 {offsets = [0, 80], sizes = [8, 8], strides = [1, 1]} : vector<8x128xf32> to vector<8x8xf32>
    %31 = vector.extract_strided_slice %9 {offsets = [0, 88], sizes = [8, 8], strides = [1, 1]} : vector<8x128xf32> to vector<8x8xf32>
    %32 = vector.shape_cast %28 : vector<8x8xf32> to vector<1x8x8xf32>
    %33 = vector.shape_cast %29 : vector<8x8xf32> to vector<1x8x8xf32>
    %34 = vector.shape_cast %30 : vector<8x8xf32> to vector<1x8x8xf32>
    %35 = vector.shape_cast %31 : vector<8x8xf32> to vector<1x8x8xf32>
    %36 = tpu.concatenate %32, %33, %34, %35 in 0 : vector<1x8x8xf32>, vector<1x8x8xf32>, vector<1x8x8xf32>, vector<1x8x8xf32> -> vector<4x8x8xf32>
    "tpu.trace_start"() <{level = 10 : i32, message = "htd,hsd->hts"}> : () -> ()
    %cst_11 = arith.constant dense<0.000000e+00> : vector<4x8x8xf32>
    %37 = tpu.matmul %18, %27, %cst_11 {dimension_numbers = #tpu.dot_dimension_numbers<[2], [2], [1], [1], [0, 0, 0, 1, 1, 1], [0], [0]>} : vector<4x8x8xf32>, vector<4x8x8xf32>, vector<4x8x8xf32> -> vector<4x8x8xf32>
    "tpu.trace_stop"() : () -> ()
    %cst_12 = arith.constant 0.353553385 : f32
    %38 = vector.broadcast %cst_12 : f32 to vector<4x8x8xf32>
    %39 = arith.mulf %37, %38 : vector<4x8x8xf32>
    %cst_13 = arith.constant dense<0xFF800000> : vector<4x8xf32>
    %40 = vector.multi_reduction <maximumf>, %39, %cst_13 [2] : vector<4x8x8xf32> to vector<4x8xf32>
    %41 = vector.shape_cast %40 : vector<4x8xf32> to vector<4x8x1xf32>
    %42 = vector.broadcast %41 : vector<4x8x1xf32> to vector<4x8x8xf32>
    %43 = arith.subf %39, %42 : vector<4x8x8xf32>
    %44 = math.exp %43 : vector<4x8x8xf32>
    %cst_14 = arith.constant dense<0.000000e+00> : vector<4x8xf32>
    %45 = vector.multi_reduction <add>, %44, %cst_14 [2] : vector<4x8x8xf32> to vector<4x8xf32>
    %46 = vector.shape_cast %45 : vector<4x8xf32> to vector<4x8x1xf32>
    %47 = tpu.reciprocal %46 {approx = true} : vector<4x8x1xf32> -> vector<4x8x1xf32>
    %48 = vector.broadcast %47 : vector<4x8x1xf32> to vector<4x8x8xf32>
    %49 = arith.mulf %44, %48 : vector<4x8x8xf32>
    "tpu.trace_start"() <{level = 10 : i32, message = "hts,hsd->htd"}> : () -> ()
    %cst_15 = arith.constant dense<0.000000e+00> : vector<4x8x8xf32>
    %50 = tpu.matmul %49, %36, %cst_15 {dimension_numbers = #tpu.dot_dimension_numbers<[2], [1], [1], [2], [0, 0, 0, 1, 1, 2], [0], [0]>} : vector<4x8x8xf32>, vector<4x8x8xf32>, vector<4x8x8xf32> -> vector<4x8x8xf32>
    "tpu.trace_stop"() : () -> ()
    %51 = vector.extract_strided_slice %50 {offsets = [0, 0, 0], sizes = [1, 8, 8], strides = [1, 1, 1]} : vector<4x8x8xf32> to vector<1x8x8xf32>
    %52 = vector.shape_cast %51 : vector<1x8x8xf32> to vector<8x8xf32>
    %c0_16 = arith.constant 0 : index
    %c0_17 = arith.constant 0 : index
    %53 = vector.load %arg13[%c0_16, %c0_17] : memref<8x32xf32, #tpu.memory_space<vmem>>, vector<8x8xf32>
    tpu.vector_store %arg13[%c0_16, %c0_17], %52 {strides = array<i32>} : memref<8x32xf32, #tpu.memory_space<vmem>>, vector<8x8xf32>,
    %54 = vector.extract_strided_slice %50 {offsets = [1, 0, 0], sizes = [1, 8, 8], strides = [1, 1, 1]} : vector<4x8x8xf32> to vector<1x8x8xf32>
    %55 = vector.shape_cast %54 : vector<1x8x8xf32> to vector<8x8xf32>
    %c0_18 = arith.constant 0 : index
    %c8 = arith.constant 8 : index
    %56 = vector.load %arg13[%c0_18, %c8] : memref<8x32xf32, #tpu.memory_space<vmem>>, vector<8x8xf32>
    tpu.vector_store %arg13[%c0_18, %c8], %55 {strides = array<i32>} : memref<8x32xf32, #tpu.memory_space<vmem>>, vector<8x8xf32>,
    %57 = vector.extract_strided_slice %50 {offsets = [2, 0, 0], sizes = [1, 8, 8], strides = [1, 1, 1]} : vector<4x8x8xf32> to vector<1x8x8xf32>
    %58 = vector.shape_cast %57 : vector<1x8x8xf32> to vector<8x8xf32>
    %c0_19 = arith.constant 0 : index
    %c16 = arith.constant 16 : index
    %59 = vector.load %arg13[%c0_19, %c16] : memref<8x32xf32, #tpu.memory_space<vmem>>, vector<8x8xf32>
    tpu.vector_store %arg13[%c0_19, %c16], %58 {strides = array<i32>} : memref<8x32xf32, #tpu.memory_space<vmem>>, vector<8x8xf32>,
    %60 = vector.extract_strided_slice %50 {offsets = [3, 0, 0], sizes = [1, 8, 8], strides = [1, 1, 1]} : vector<4x8x8xf32> to vector<1x8x8xf32>
    %61 = vector.shape_cast %60 : vector<1x8x8xf32> to vector<8x8xf32>
    %c0_20 = arith.constant 0 : index
    %c24 = arith.constant 24 : index
    %62 = vector.load %arg13[%c0_20, %c24] : memref<8x32xf32, #tpu.memory_space<vmem>>, vector<8x8xf32>
    tpu.vector_store %arg13[%c0_20, %c24], %61 {strides = array<i32>} : memref<8x32xf32, #tpu.memory_space<vmem>>, vector<8x8xf32>,
    %63 = vector.extract_strided_slice %5 {offsets = [0, 96], sizes = [32, 32], strides = [1, 1]} : vector<32x128xf32> to vector<32x32xf32>
    %64 = vector.extract_strided_slice %6 {offsets = [0, 96], sizes = [1, 32], strides = [1, 1]} : vector<1x128xf32> to vector<1x32xf32>
    %c0_21 = arith.constant 0 : index
    %c0_22 = arith.constant 0 : index
    %65 = vector.load %arg13[%c0_21, %c0_22] : memref<8x32xf32, #tpu.memory_space<vmem>>, vector<8x32xf32>
    %cst_23 = arith.constant dense<0.000000e+00> : vector<8x32xf32>
    %66 = tpu.matmul %65, %63, %cst_23 {dimension_numbers = #tpu.dot_dimension_numbers<[1], [0], [0], [1], [0, 0, 1, 1], [], []>} : vector<8x32xf32>, vector<32x32xf32>, vector<8x32xf32> -> vector<8x32xf32>
    %67 = vector.broadcast %64 : vector<1x32xf32> to vector<8x32xf32>
    %68 = arith.addf %66, %67 : vector<8x32xf32>
    %69 = vector.extract_strided_slice %4 {offsets = [0, 0], sizes = [1, 32], strides = [1, 1]} : vector<6x32xf32> to vector<1x32xf32>
    %70 = vector.extract_strided_slice %4 {offsets = [1, 0], sizes = [1, 32], strides = [1, 1]} : vector<6x32xf32> to vector<1x32xf32>
    %71 = arith.addf %1, %68 : vector<8x32xf32>
    %cst_24 = arith.constant dense<0.000000e+00> : vector<8xf32>
    %72 = vector.multi_reduction <add>, %71, %cst_24 [1] : vector<8x32xf32> to vector<8xf32>
    %73 = vector.shape_cast %72 : vector<8xf32> to vector<8x1xf32>
    %cst_25 = arith.constant 3.200000e+01 : f32
    %74 = vector.broadcast %cst_25 : f32 to vector<8x1xf32>
    %75 = arith.divf %73, %74 : vector<8x1xf32>
    %76 = vector.broadcast %75 : vector<8x1xf32> to vector<8x32xf32>
    %77 = arith.subf %71, %76 : vector<8x32xf32>
    %78 = arith.mulf %77, %77 : vector<8x32xf32>
    %cst_26 = arith.constant dense<0.000000e+00> : vector<8xf32>
    %79 = vector.multi_reduction <add>, %78, %cst_26 [1] : vector<8x32xf32> to vector<8xf32>
    %80 = vector.shape_cast %79 : vector<8xf32> to vector<8x1xf32>
    %cst_27 = arith.constant 3.200000e+01 : f32
    %81 = vector.broadcast %cst_27 : f32 to vector<8x1xf32>
    %82 = arith.divf %80, %81 : vector<8x1xf32>
    %83 = vector.broadcast %75 : vector<8x1xf32> to vector<8x32xf32>
    %84 = arith.subf %71, %83 : vector<8x32xf32>
    %cst_28 = arith.constant 9.99999974E-6 : f32
    %85 = vector.broadcast %cst_28 : f32 to vector<8x1xf32>
    %86 = arith.addf %82, %85 : vector<8x1xf32>
    %87 = math.rsqrt %86 : vector<8x1xf32>
    %88 = vector.broadcast %87 : vector<8x1xf32> to vector<8x32xf32>
    %89 = arith.mulf %84, %88 : vector<8x32xf32>
    %90 = vector.broadcast %69 : vector<1x32xf32> to vector<8x32xf32>
    %91 = arith.mulf %89, %90 : vector<8x32xf32>
    %92 = vector.broadcast %70 : vector<1x32xf32> to vector<8x32xf32>
    %93 = arith.addf %91, %92 : vector<8x32xf32>
    %c0_29 = arith.constant 0 : index
    %c0_30 = arith.constant 0 : index
    %94 = vector.load %arg5[%c0_29, %c0_30] : memref<32x128xf32, #tpu.memory_space<vmem>>, vector<32x128xf32>
    %c0_31 = arith.constant 0 : index
    %c0_32 = arith.constant 0 : index
    %95 = vector.load %arg6[%c0_31, %c0_32] : memref<1x128xf32, #tpu.memory_space<vmem>>, vector<1x128xf32>
    %cst_33 = arith.constant dense<0.000000e+00> : vector<8x128xf32>
    %96 = tpu.matmul %93, %94, %cst_33 {dimension_numbers = #tpu.dot_dimension_numbers<[1], [0], [0], [1], [0, 0, 1, 1], [], []>} : vector<8x32xf32>, vector<32x128xf32>, vector<8x128xf32> -> vector<8x128xf32>
    %97 = vector.broadcast %95 : vector<1x128xf32> to vector<8x128xf32>
    %98 = arith.addf %96, %97 : vector<8x128xf32>
    %cst_34 = arith.constant dense<0.000000e+00> : vector<8x128xf32>
    %99 = tpu.matmul %3, %94, %cst_34 {dimension_numbers = #tpu.dot_dimension_numbers<[1], [0], [0], [1], [0, 0, 1, 1], [], []>} : vector<8x32xf32>, vector<32x128xf32>, vector<8x128xf32> -> vector<8x128xf32>
    %100 = vector.broadcast %95 : vector<1x128xf32> to vector<8x128xf32>
    %101 = arith.addf %99, %100 : vector<8x128xf32>
    %102 = vector.extract_strided_slice %98 {offsets = [0, 0], sizes = [8, 8], strides = [1, 1]} : vector<8x128xf32> to vector<8x8xf32>
    %103 = vector.extract_strided_slice %98 {offsets = [0, 8], sizes = [8, 8], strides = [1, 1]} : vector<8x128xf32> to vector<8x8xf32>
    %104 = vector.extract_strided_slice %98 {offsets = [0, 16], sizes = [8, 8], strides = [1, 1]} : vector<8x128xf32> to vector<8x8xf32>
    %105 = vector.extract_strided_slice %98 {offsets = [0, 24], sizes = [8, 8], strides = [1, 1]} : vector<8x128xf32> to vector<8x8xf32>
    %106 = vector.shape_cast %102 : vector<8x8xf32> to vector<1x8x8xf32>
    %107 = vector.shape_cast %103 : vector<8x8xf32> to vector<1x8x8xf32>
    %108 = vector.shape_cast %104 : vector<8x8xf32> to vector<1x8x8xf32>
    %109 = vector.shape_cast %105 : vector<8x8xf32> to vector<1x8x8xf32>
    %110 = tpu.concatenate %106, %107, %108, %109 in 0 : vector<1x8x8xf32>, vector<1x8x8xf32>, vector<1x8x8xf32>, vector<1x8x8xf32> -> vector<4x8x8xf32>
    %111 = vector.extract_strided_slice %101 {offsets = [0, 32], sizes = [8, 8], strides = [1, 1]} : vector<8x128xf32> to vector<8x8xf32>
    %112 = vector.extract_strided_slice %101 {offsets = [0, 40], sizes = [8, 8], strides = [1, 1]} : vector<8x128xf32> to vector<8x8xf32>
    %113 = vector.extract_strided_slice %101 {offsets = [0, 48], sizes = [8, 8], strides = [1, 1]} : vector<8x128xf32> to vector<8x8xf32>
    %114 = vector.extract_strided_slice %101 {offsets = [0, 56], sizes = [8, 8], strides = [1, 1]} : vector<8x128xf32> to vector<8x8xf32>
    %115 = vector.shape_cast %111 : vector<8x8xf32> to vector<1x8x8xf32>
    %116 = vector.shape_cast %112 : vector<8x8xf32> to vector<1x8x8xf32>
    %117 = vector.shape_cast %113 : vector<8x8xf32> to vector<1x8x8xf32>
    %118 = vector.shape_cast %114 : vector<8x8xf32> to vector<1x8x8xf32>
    %119 = tpu.concatenate %115, %116, %117, %118 in 0 : vector<1x8x8xf32>, vector<1x8x8xf32>, vector<1x8x8xf32>, vector<1x8x8xf32> -> vector<4x8x8xf32>
    %120 = vector.extract_strided_slice %101 {offsets = [0, 64], sizes = [8, 8], strides = [1, 1]} : vector<8x128xf32> to vector<8x8xf32>
    %121 = vector.extract_strided_slice %101 {offsets = [0, 72], sizes = [8, 8], strides = [1, 1]} : vector<8x128xf32> to vector<8x8xf32>
    %122 = vector.extract_strided_slice %101 {offsets = [0, 80], sizes = [8, 8], strides = [1, 1]} : vector<8x128xf32> to vector<8x8xf32>
    %123 = vector.extract_strided_slice %101 {offsets = [0, 88], sizes = [8, 8], strides = [1, 1]} : vector<8x128xf32> to vector<8x8xf32>
    %124 = vector.shape_cast %120 : vector<8x8xf32> to vector<1x8x8xf32>
    %125 = vector.shape_cast %121 : vector<8x8xf32> to vector<1x8x8xf32>
    %126 = vector.shape_cast %122 : vector<8x8xf32> to vector<1x8x8xf32>
    %127 = vector.shape_cast %123 : vector<8x8xf32> to vector<1x8x8xf32>
    %128 = tpu.concatenate %124, %125, %126, %127 in 0 : vector<1x8x8xf32>, vector<1x8x8xf32>, vector<1x8x8xf32>, vector<1x8x8xf32> -> vector<4x8x8xf32>
    "tpu.trace_start"() <{level = 10 : i32, message = "htd,hsd->hts"}> : () -> ()
    %cst_35 = arith.constant dense<0.000000e+00> : vector<4x8x8xf32>
    %129 = tpu.matmul %110, %119, %cst_35 {dimension_numbers = #tpu.dot_dimension_numbers<[2], [2], [1], [1], [0, 0, 0, 1, 1, 1], [0], [0]>} : vector<4x8x8xf32>, vector<4x8x8xf32>, vector<4x8x8xf32> -> vector<4x8x8xf32>
    "tpu.trace_stop"() : () -> ()
    %cst_36 = arith.constant 0.353553385 : f32
    %130 = vector.broadcast %cst_36 : f32 to vector<4x8x8xf32>
    %131 = arith.mulf %129, %130 : vector<4x8x8xf32>
    %cst_37 = arith.constant dense<0xFF800000> : vector<4x8xf32>
    %132 = vector.multi_reduction <maximumf>, %131, %cst_37 [2] : vector<4x8x8xf32> to vector<4x8xf32>
    %133 = vector.shape_cast %132 : vector<4x8xf32> to vector<4x8x1xf32>
    %134 = vector.broadcast %133 : vector<4x8x1xf32> to vector<4x8x8xf32>
    %135 = arith.subf %131, %134 : vector<4x8x8xf32>
    %136 = math.exp %135 : vector<4x8x8xf32>
    %cst_38 = arith.constant dense<0.000000e+00> : vector<4x8xf32>
    %137 = vector.multi_reduction <add>, %136, %cst_38 [2] : vector<4x8x8xf32> to vector<4x8xf32>
    %138 = vector.shape_cast %137 : vector<4x8xf32> to vector<4x8x1xf32>
    %139 = tpu.reciprocal %138 {approx = true} : vector<4x8x1xf32> -> vector<4x8x1xf32>
    %140 = vector.broadcast %139 : vector<4x8x1xf32> to vector<4x8x8xf32>
    %141 = arith.mulf %136, %140 : vector<4x8x8xf32>
    "tpu.trace_start"() <{level = 10 : i32, message = "hts,hsd->htd"}> : () -> ()
    %cst_39 = arith.constant dense<0.000000e+00> : vector<4x8x8xf32>
    %142 = tpu.matmul %141, %128, %cst_39 {dimension_numbers = #tpu.dot_dimension_numbers<[2], [1], [1], [2], [0, 0, 0, 1, 1, 2], [0], [0]>} : vector<4x8x8xf32>, vector<4x8x8xf32>, vector<4x8x8xf32> -> vector<4x8x8xf32>
    "tpu.trace_stop"() : () -> ()
    %143 = vector.extract_strided_slice %142 {offsets = [0, 0, 0], sizes = [1, 8, 8], strides = [1, 1, 1]} : vector<4x8x8xf32> to vector<1x8x8xf32>
    %144 = vector.shape_cast %143 : vector<1x8x8xf32> to vector<8x8xf32>
    %c0_40 = arith.constant 0 : index
    %c0_41 = arith.constant 0 : index
    %145 = vector.load %arg13[%c0_40, %c0_41] : memref<8x32xf32, #tpu.memory_space<vmem>>, vector<8x8xf32>
    tpu.vector_store %arg13[%c0_40, %c0_41], %144 {strides = array<i32>} : memref<8x32xf32, #tpu.memory_space<vmem>>, vector<8x8xf32>,
    %146 = vector.extract_strided_slice %142 {offsets = [1, 0, 0], sizes = [1, 8, 8], strides = [1, 1, 1]} : vector<4x8x8xf32> to vector<1x8x8xf32>
    %147 = vector.shape_cast %146 : vector<1x8x8xf32> to vector<8x8xf32>
    %c0_42 = arith.constant 0 : index
    %c8_43 = arith.constant 8 : index
    %148 = vector.load %arg13[%c0_42, %c8_43] : memref<8x32xf32, #tpu.memory_space<vmem>>, vector<8x8xf32>
    tpu.vector_store %arg13[%c0_42, %c8_43], %147 {strides = array<i32>} : memref<8x32xf32, #tpu.memory_space<vmem>>, vector<8x8xf32>,
    %149 = vector.extract_strided_slice %142 {offsets = [2, 0, 0], sizes = [1, 8, 8], strides = [1, 1, 1]} : vector<4x8x8xf32> to vector<1x8x8xf32>
    %150 = vector.shape_cast %149 : vector<1x8x8xf32> to vector<8x8xf32>
    %c0_44 = arith.constant 0 : index
    %c16_45 = arith.constant 16 : index
    %151 = vector.load %arg13[%c0_44, %c16_45] : memref<8x32xf32, #tpu.memory_space<vmem>>, vector<8x8xf32>
    tpu.vector_store %arg13[%c0_44, %c16_45], %150 {strides = array<i32>} : memref<8x32xf32, #tpu.memory_space<vmem>>, vector<8x8xf32>,
    %152 = vector.extract_strided_slice %142 {offsets = [3, 0, 0], sizes = [1, 8, 8], strides = [1, 1, 1]} : vector<4x8x8xf32> to vector<1x8x8xf32>
    %153 = vector.shape_cast %152 : vector<1x8x8xf32> to vector<8x8xf32>
    %c0_46 = arith.constant 0 : index
    %c24_47 = arith.constant 24 : index
    %154 = vector.load %arg13[%c0_46, %c24_47] : memref<8x32xf32, #tpu.memory_space<vmem>>, vector<8x8xf32>
    tpu.vector_store %arg13[%c0_46, %c24_47], %153 {strides = array<i32>} : memref<8x32xf32, #tpu.memory_space<vmem>>, vector<8x8xf32>,
    %155 = vector.extract_strided_slice %94 {offsets = [0, 96], sizes = [32, 32], strides = [1, 1]} : vector<32x128xf32> to vector<32x32xf32>
    %156 = vector.extract_strided_slice %95 {offsets = [0, 96], sizes = [1, 32], strides = [1, 1]} : vector<1x128xf32> to vector<1x32xf32>
    %c0_48 = arith.constant 0 : index
    %c0_49 = arith.constant 0 : index
    %157 = vector.load %arg13[%c0_48, %c0_49] : memref<8x32xf32, #tpu.memory_space<vmem>>, vector<8x32xf32>
    %cst_50 = arith.constant dense<0.000000e+00> : vector<8x32xf32>
    %158 = tpu.matmul %157, %155, %cst_50 {dimension_numbers = #tpu.dot_dimension_numbers<[1], [0], [0], [1], [0, 0, 1, 1], [], []>} : vector<8x32xf32>, vector<32x32xf32>, vector<8x32xf32> -> vector<8x32xf32>
    %159 = vector.broadcast %156 : vector<1x32xf32> to vector<8x32xf32>
    %160 = arith.addf %158, %159 : vector<8x32xf32>
    %161 = vector.extract_strided_slice %4 {offsets = [2, 0], sizes = [1, 32], strides = [1, 1]} : vector<6x32xf32> to vector<1x32xf32>
    %162 = vector.extract_strided_slice %4 {offsets = [3, 0], sizes = [1, 32], strides = [1, 1]} : vector<6x32xf32> to vector<1x32xf32>
    %163 = arith.addf %93, %160 : vector<8x32xf32>
    %cst_51 = arith.constant dense<0.000000e+00> : vector<8xf32>
    %164 = vector.multi_reduction <add>, %163, %cst_51 [1] : vector<8x32xf32> to vector<8xf32>
    %165 = vector.shape_cast %164 : vector<8xf32> to vector<8x1xf32>
    %cst_52 = arith.constant 3.200000e+01 : f32
    %166 = vector.broadcast %cst_52 : f32 to vector<8x1xf32>
    %167 = arith.divf %165, %166 : vector<8x1xf32>
    %168 = vector.broadcast %167 : vector<8x1xf32> to vector<8x32xf32>
    %169 = arith.subf %163, %168 : vector<8x32xf32>
    %170 = arith.mulf %169, %169 : vector<8x32xf32>
    %cst_53 = arith.constant dense<0.000000e+00> : vector<8xf32>
    %171 = vector.multi_reduction <add>, %170, %cst_53 [1] : vector<8x32xf32> to vector<8xf32>
    %172 = vector.shape_cast %171 : vector<8xf32> to vector<8x1xf32>
    %cst_54 = arith.constant 3.200000e+01 : f32
    %173 = vector.broadcast %cst_54 : f32 to vector<8x1xf32>
    %174 = arith.divf %172, %173 : vector<8x1xf32>
    %175 = vector.broadcast %167 : vector<8x1xf32> to vector<8x32xf32>
    %176 = arith.subf %163, %175 : vector<8x32xf32>
    %cst_55 = arith.constant 9.99999974E-6 : f32
    %177 = vector.broadcast %cst_55 : f32 to vector<8x1xf32>
    %178 = arith.addf %174, %177 : vector<8x1xf32>
    %179 = math.rsqrt %178 : vector<8x1xf32>
    %180 = vector.broadcast %179 : vector<8x1xf32> to vector<8x32xf32>
    %181 = arith.mulf %176, %180 : vector<8x32xf32>
    %182 = vector.broadcast %161 : vector<1x32xf32> to vector<8x32xf32>
    %183 = arith.mulf %181, %182 : vector<8x32xf32>
    %184 = vector.broadcast %162 : vector<1x32xf32> to vector<8x32xf32>
    %185 = arith.addf %183, %184 : vector<8x32xf32>
    %c0_56 = arith.constant 0 : index
    %c0_57 = arith.constant 0 : index
    %186 = vector.load %arg7[%c0_56, %c0_57] : memref<32x64xf32, #tpu.memory_space<vmem>>, vector<32x64xf32>
    %cst_58 = arith.constant dense<0.000000e+00> : vector<8x64xf32>
    %187 = tpu.matmul %185, %186, %cst_58 {dimension_numbers = #tpu.dot_dimension_numbers<[1], [0], [0], [1], [0, 0, 1, 1], [], []>} : vector<8x32xf32>, vector<32x64xf32>, vector<8x64xf32> -> vector<8x64xf32>
    %c0_59 = arith.constant 0 : index
    %c0_60 = arith.constant 0 : index
    %188 = vector.load %arg8[%c0_59, %c0_60] : memref<1x64xf32, #tpu.memory_space<vmem>>, vector<1x64xf32>
    %189 = vector.broadcast %188 : vector<1x64xf32> to vector<8x64xf32>
    %190 = arith.addf %187, %189 : vector<8x64xf32>
    %cst_61 = arith.constant 0.000000e+00 : f32
    %191 = vector.broadcast %cst_61 : f32 to vector<8x64xf32>
    %192 = arith.maximumf %190, %191 : vector<8x64xf32>
    %c0_62 = arith.constant 0 : index
    %c0_63 = arith.constant 0 : index
    %193 = vector.load %arg9[%c0_62, %c0_63] : memref<64x32xf32, #tpu.memory_space<vmem>>, vector<64x32xf32>
    %cst_64 = arith.constant dense<0.000000e+00> : vector<8x32xf32>
    %194 = tpu.matmul %192, %193, %cst_64 {dimension_numbers = #tpu.dot_dimension_numbers<[1], [0], [0], [1], [0, 0, 1, 1], [], []>} : vector<8x64xf32>, vector<64x32xf32>, vector<8x32xf32> -> vector<8x32xf32>
    %c0_65 = arith.constant 0 : index
    %c0_66 = arith.constant 0 : index
    %195 = vector.load %arg10[%c0_65, %c0_66] : memref<1x32xf32, #tpu.memory_space<vmem>>, vector<1x32xf32>
    %196 = vector.broadcast %195 : vector<1x32xf32> to vector<8x32xf32>
    %197 = arith.addf %194, %196 : vector<8x32xf32>
    %198 = vector.extract_strided_slice %4 {offsets = [4, 0], sizes = [1, 32], strides = [1, 1]} : vector<6x32xf32> to vector<1x32xf32>
    %199 = vector.extract_strided_slice %4 {offsets = [5, 0], sizes = [1, 32], strides = [1, 1]} : vector<6x32xf32> to vector<1x32xf32>
    %200 = arith.addf %185, %197 : vector<8x32xf32>
    %cst_67 = arith.constant dense<0.000000e+00> : vector<8xf32>
    %201 = vector.multi_reduction <add>, %200, %cst_67 [1] : vector<8x32xf32> to vector<8xf32>
    %202 = vector.shape_cast %201 : vector<8xf32> to vector<8x1xf32>
    %cst_68 = arith.constant 3.200000e+01 : f32
    %203 = vector.broadcast %cst_68 : f32 to vector<8x1xf32>
    %204 = arith.divf %202, %203 : vector<8x1xf32>
    %205 = vector.broadcast %204 : vector<8x1xf32> to vector<8x32xf32>
    %206 = arith.subf %200, %205 : vector<8x32xf32>
    %207 = arith.mulf %206, %206 : vector<8x32xf32>
    %cst_69 = arith.constant dense<0.000000e+00> : vector<8xf32>
    %208 = vector.multi_reduction <add>, %207, %cst_69 [1] : vector<8x32xf32> to vector<8xf32>
    %209 = vector.shape_cast %208 : vector<8xf32> to vector<8x1xf32>
    %cst_70 = arith.constant 3.200000e+01 : f32
    %210 = vector.broadcast %cst_70 : f32 to vector<8x1xf32>
    %211 = arith.divf %209, %210 : vector<8x1xf32>
    %212 = vector.broadcast %204 : vector<8x1xf32> to vector<8x32xf32>
    %213 = arith.subf %200, %212 : vector<8x32xf32>
    %cst_71 = arith.constant 9.99999974E-6 : f32
    %214 = vector.broadcast %cst_71 : f32 to vector<8x1xf32>
    %215 = arith.addf %211, %214 : vector<8x1xf32>
    %216 = math.rsqrt %215 : vector<8x1xf32>
    %217 = vector.broadcast %216 : vector<8x1xf32> to vector<8x32xf32>
    %218 = arith.mulf %213, %217 : vector<8x32xf32>
    %219 = vector.broadcast %198 : vector<1x32xf32> to vector<8x32xf32>
    %220 = arith.mulf %218, %219 : vector<8x32xf32>
    %221 = vector.broadcast %199 : vector<1x32xf32> to vector<8x32xf32>
    %222 = arith.addf %220, %221 : vector<8x32xf32>
    %c0_72 = arith.constant 0 : index
    %c0_73 = arith.constant 0 : index
    %c0_74 = arith.constant 0 : index
    %223 = vector.load %arg12[%c0_72, %c0_73, %c0_74] : memref<1x8x32xf32, #tpu.memory_space<vmem>>, vector<1x8x32xf32>
    %224 = vector.shape_cast %223 : vector<1x8x32xf32> to vector<8x32xf32>
    %225 = vector.shape_cast %222 : vector<8x32xf32> to vector<1x8x32xf32>
    tpu.vector_store %arg12[%c0_72, %c0_73, %c0_74], %225 {strides = array<i32>} : memref<1x8x32xf32, #tpu.memory_space<vmem>>, vector<1x8x32xf32>,
    return
  }
  func.func @transform_0(%arg0: i32) -> (i32, i32, i32) {
    %c0_i32 = arith.constant 0 : i32
    %c0_i32_0 = arith.constant 0 : i32
    %c0_i32_1 = arith.constant 0 : i32
    return %arg0, %c0_i32, %c0_i32_0 : i32, i32, i32
  }
  func.func @transform_1(%arg0: i32) -> (i32, i32, i32) {
    %c0_i32 = arith.constant 0 : i32
    %c0_i32_0 = arith.constant 0 : i32
    %c0_i32_1 = arith.constant 0 : i32
    return %arg0, %c0_i32, %c0_i32_0 : i32, i32, i32
  }
  func.func @transform_2(%arg0: i32) -> (i32, i32) {
    %c0_i32 = arith.constant 0 : i32
    %c0_i32_0 = arith.constant 0 : i32
    %c0_i32_1 = arith.constant 0 : i32
    return %c0_i32, %c0_i32_0 : i32, i32
  }
  func.func @transform_3(%arg0: i32) -> (i32, i32) {
    %c0_i32 = arith.constant 0 : i32
    %c0_i32_0 = arith.constant 0 : i32
    %c0_i32_1 = arith.constant 0 : i32
    return %c0_i32, %c0_i32_0 : i32, i32
  }
  func.func @transform_4(%arg0: i32) -> (i32, i32) {
    %c0_i32 = arith.constant 0 : i32
    %c0_i32_0 = arith.constant 0 : i32
    %c0_i32_1 = arith.constant 0 : i32
    return %c0_i32, %c0_i32_0 : i32, i32
  }
  func.func @transform_5(%arg0: i32) -> (i32, i32) {
    %c0_i32 = arith.constant 0 : i32
    %c0_i32_0 = arith.constant 0 : i32
    %c0_i32_1 = arith.constant 0 : i32
    return %c0_i32, %c0_i32_0 : i32, i32
  }
  func.func @transform_6(%arg0: i32) -> (i32, i32) {
    %c0_i32 = arith.constant 0 : i32
    %c0_i32_0 = arith.constant 0 : i32
    %c0_i32_1 = arith.constant 0 : i32
    return %c0_i32, %c0_i32_0 : i32, i32
  }
  func.func @transform_7(%arg0: i32) -> (i32, i32) {
    %c0_i32 = arith.constant 0 : i32
    %c0_i32_0 = arith.constant 0 : i32
    %c0_i32_1 = arith.constant 0 : i32
    return %c0_i32, %c0_i32_0 : i32, i32
  }
  func.func @transform_8(%arg0: i32) -> (i32, i32) {
    %c0_i32 = arith.constant 0 : i32
    %c0_i32_0 = arith.constant 0 : i32
    %c0_i32_1 = arith.constant 0 : i32
    return %c0_i32, %c0_i32_0 : i32, i32
  }
  func.func @transform_9(%arg0: i32) -> (i32, i32) {
    %c0_i32 = arith.constant 0 : i32
    %c0_i32_0 = arith.constant 0 : i32
    %c0_i32_1 = arith.constant 0 : i32
    return %c0_i32, %c0_i32_0 : i32, i32
  }
  func.func @transform_10(%arg0: i32) -> (i32, i32) {
    %c0_i32 = arith.constant 0 : i32
    %c0_i32_0 = arith.constant 0 : i32
    %c0_i32_1 = arith.constant 0 : i32
    return %c0_i32, %c0_i32_0 : i32, i32
  }
  func.func @transform_11(%arg0: i32) -> (i32, i32, i32) {
    %c0_i32 = arith.constant 0 : i32
    %c0_i32_0 = arith.constant 0 : i32
    %c0_i32_1 = arith.constant 0 : i32
    return %arg0, %c0_i32, %c0_i32_0 : i32, i32, i32
  }
}

</mosaic_0001>

<llo_original>
// kernel: decoder_layer.1
$region0: #{decoder_layer.1}
  #allocation0 [shape = 'u32[]', space=smem, size = 0x4, offset = 0x4, fixed_abs, tag = 'smem constant byte address 0x4 - core index']
  #allocation1 [shape = 'u32[72,128]{1,0:T(1,128)}', space=vmem, size = 0x9000, scoped, tag = 'internal scratch']
  #allocation2 [shape = 'f32[8,32]{1,0:T(8,128)}', space=vmem, size = 0x1000, scoped, tag = 'scratch operand']
  %s0 = inlined_call_operand.vmem [shape: f32[2,8,32], index: 0, kind: input, shape index: {}]
  %s1 = inlined_call_operand.vmem [shape: f32[2,8,32], index: 1, kind: input, shape index: {}]
  %s2 = inlined_call_operand.vmem [shape: f32[32,128], index: 2, kind: input, shape index: {}]
  %s3 = inlined_call_operand.vmem [shape: f32[1,128], index: 3, kind: input, shape index: {}]
  %s4 = inlined_call_operand.vmem [shape: f32[32,128], index: 4, kind: input, shape index: {}]
  %s5 = inlined_call_operand.vmem [shape: f32[1,128], index: 5, kind: input, shape index: {}]
  %s6 = inlined_call_operand.vmem [shape: f32[32,64], index: 6, kind: input, shape index: {}]
  %s7 = inlined_call_operand.vmem [shape: f32[1,64], index: 7, kind: input, shape index: {}]
  %s8 = inlined_call_operand.vmem [shape: f32[64,32], index: 8, kind: input, shape index: {}]
  %s9 = inlined_call_operand.vmem [shape: f32[1,32], index: 9, kind: input, shape index: {}]
  %s10 = inlined_call_operand.vmem [shape: f32[6,32], index: 10, kind: input, shape index: {}]
  %s11 = inlined_call_operand.hbm [shape: f32[2,8,32], index: 11, kind: output, shape index: {}]
  %s12 = sld [smem:[#allocation0]]
  $region77: #{decoder_layer.1} parent=0
    _
  %s14 = ssub.s32 1, %s12
  %s15 = scalar_select 0, %s14, %s12
  $region1: #{decoder_layer.1} parent=0
    #allocation3 [shape = 'u8[8192]{0}', space=vmem, size = 0x2000, scoped, tag = 'output window, operand 0']
    #allocation4 [shape = 's32[2]{0}', space=sflag, size = 0x8, scoped, tag = 'scoped memory for decoder_layer.1']
    %16 = vsyncpa [#allocation4], 0
    %s17 = scalar_lea.sflag [#allocation4], 1
    %18 = vsyncpa %s17, 0
    loop: start=0, step=1, limit=4
    $region2: #{decoder_layer.1} parent=1 // loop_pre_header
      _
    $region3: #{decoder_layer.1} parent=1 // loop_header
      %s20 = sphi 0, %s24
      %p21 = scmp.ge.s32.totalorder %s20, 4
      %s30 = sphi 0, %s32
      %s33 = sphi 0, %s30
      %s34 = sphi 0, %s33
      %s50 = sphi 0, %s34
      %s56 = sphi 0, %s58
      %s59 = sphi 0, %s56
      %s60 = sphi 0, %s59
      %s76 = sphi 0, %s60
      %s80 = sphi 0, %s80
      %s82 = sphi 0, %s80
      %s83 = sphi 0, %s82
      %s97 = sphi 0, %s83
      %s101 = sphi 0, %s101
      %s103 = sphi 0, %s101
      %s104 = sphi 0, %s103
      %s118 = sphi 0, %s104
      %s122 = sphi 0, %s122
      %s124 = sphi 0, %s122
      %s125 = sphi 0, %s124
      %s139 = sphi 0, %s125
      %s143 = sphi 0, %s143
      %s145 = sphi 0, %s143
      %s146 = sphi 0, %s145
      %s160 = sphi 0, %s146
      %s164 = sphi 0, %s164
      %s166 = sphi 0, %s164
      %s167 = sphi 0, %s166
      %s181 = sphi 0, %s167
      %s185 = sphi 0, %s185
      %s187 = sphi 0, %s185
      %s188 = sphi 0, %s187
      %s202 = sphi 0, %s188
      %s206 = sphi 0, %s206
      %s208 = sphi 0, %s206
      %s209 = sphi 0, %s208
      %s223 = sphi 0, %s209
      %s227 = sphi 0, %s227
      %s229 = sphi 0, %s227
      %s230 = sphi 0, %s229
      %s244 = sphi 0, %s230
      %s248 = sphi 0, %s248
      %s250 = sphi 0, %s248
      %s251 = sphi 0, %s250
      %s265 = sphi 0, %s251
      %s271 = sphi 0, %s273
      %s274 = sphi 0, %s271
      %s275 = sphi 0, %s274
      %s291 = sphi 0, %s275
    $region4: #{decoder_layer.1} parent=1 // loop_header_branch
      %23 = sbr.rel (%p21) target = $region8
    $region5: #{decoder_layer.1} parent=1 // loop_body
      %s25 = ssub.s32 %s20, 1
      %s26 = ssub.s32 %s20, 2
      %s27 = sadd.s32 %s20, 1
      %s28 = ssub.s32 %s20, %s27
      %p29 = scmp.eq.s32.totalorder %s28, 0
      %s31 = sadd.s32 %s30, 1
      %s32 = scalar_select %p29, %s30, %s31
      %p35 = pneg %p29
      %p36 = scmp.eq.s32.totalorder %s20, 1
      %p37 = por %p35, %p36
      %p38 = scmp.ne.s32.totalorder %s30, %s33
      %p39 = scmp.eq.s32.totalorder %s20, 0
      %p40 = por %p38, %p39
      %p41 = scmp.ne.s32.totalorder %s30, %s33
      %p42 = scmp.eq.s32.totalorder %s25, 1
      %p43 = por %p41, %p42
      %p44 = scmp.ne.s32.totalorder %s33, %s34
      %p45 = scmp.eq.s32.totalorder %s25, 0
      %p46 = por %p44, %p45
      %p47 = scmp.ne.s32.totalorder %s33, %s34
      %p48 = scmp.eq.s32.totalorder %s26, 1
      %p49 = por %p47, %p48
      %p51 = scmp.ne.s32.totalorder %s34, %s50
      %p52 = scmp.eq.s32.totalorder %s26, 0
      %p53 = por %p51, %p52
      %s54 = ssub.s32 %s20, %s27
      %p55 = scmp.eq.s32.totalorder %s54, 0
      %s57 = sadd.s32 %s56, 1
      %s58 = scalar_select %p55, %s56, %s57
      %p61 = pneg %p55
      %p62 = scmp.eq.s32.totalorder %s20, 1
      %p63 = por %p61, %p62
      %p64 = scmp.ne.s32.totalorder %s56, %s59
      %p65 = scmp.eq.s32.totalorder %s20, 0
      %p66 = por %p64, %p65
      %p67 = scmp.ne.s32.totalorder %s56, %s59
      %p68 = scmp.eq.s32.totalorder %s25, 1
      %p69 = por %p67, %p68
      %p70 = scmp.ne.s32.totalorder %s59, %s60
      %p71 = scmp.eq.s32.totalorder %s25, 0
      %p72 = por %p70, %p71
      %p73 = scmp.ne.s32.totalorder %s59, %s60
      %p74 = scmp.eq.s32.totalorder %s26, 1
      %p75 = por %p73, %p74
      %p77 = scmp.ne.s32.totalorder %s60, %s76
      %p78 = scmp.eq.s32.totalorder %s26, 0
      %p79 = por %p77, %p78
      %s81 = sadd.s32 %s80, 1
      %p84 = scmp.eq.s32.totalorder %s20, 1
      %p85 = scmp.ne.s32.totalorder %s80, %s82
      %p86 = scmp.eq.s32.totalorder %s20, 0
      %p87 = por %p85, %p86
      %p88 = scmp.ne.s32.totalorder %s80, %s82
      %p89 = scmp.eq.s32.totalorder %s25, 1
      %p90 = por %p88, %p89
      %p91 = scmp.ne.s32.totalorder %s82, %s83
      %p92 = scmp.eq.s32.totalorder %s25, 0
      %p93 = por %p91, %p92
      %p94 = scmp.ne.s32.totalorder %s82, %s83
      %p95 = scmp.eq.s32.totalorder %s26, 1
      %p96 = por %p94, %p95
      %p98 = scmp.ne.s32.totalorder %s83, %s97
      %p99 = scmp.eq.s32.totalorder %s26, 0
      %p100 = por %p98, %p99
      %s102 = sadd.s32 %s101, 1
      %p105 = scmp.eq.s32.totalorder %s20, 1
      %p106 = scmp.ne.s32.totalorder %s101, %s103
      %p107 = scmp.eq.s32.totalorder %s20, 0
      %p108 = por %p106, %p107
      %p109 = scmp.ne.s32.totalorder %s101, %s103
      %p110 = scmp.eq.s32.totalorder %s25, 1
      %p111 = por %p109, %p110
      %p112 = scmp.ne.s32.totalorder %s103, %s104
      %p113 = scmp.eq.s32.totalorder %s25, 0
      %p114 = por %p112, %p113
      %p115 = scmp.ne.s32.totalorder %s103, %s104
      %p116 = scmp.eq.s32.totalorder %s26, 1
      %p117 = por %p115, %p116
      %p119 = scmp.ne.s32.totalorder %s104, %s118
      %p120 = scmp.eq.s32.totalorder %s26, 0
      %p121 = por %p119, %p120
      %s123 = sadd.s32 %s122, 1
      %p126 = scmp.eq.s32.totalorder %s20, 1
      %p127 = scmp.ne.s32.totalorder %s122, %s124
      %p128 = scmp.eq.s32.totalorder %s20, 0
      %p129 = por %p127, %p128
      %p130 = scmp.ne.s32.totalorder %s122, %s124
      %p131 = scmp.eq.s32.totalorder %s25, 1
      %p132 = por %p130, %p131
      %p133 = scmp.ne.s32.totalorder %s124, %s125
      %p134 = scmp.eq.s32.totalorder %s25, 0
      %p135 = por %p133, %p134
      %p136 = scmp.ne.s32.totalorder %s124, %s125
      %p137 = scmp.eq.s32.totalorder %s26, 1
      %p138 = por %p136, %p137
      %p140 = scmp.ne.s32.totalorder %s125, %s139
      %p141 = scmp.eq.s32.totalorder %s26, 0
      %p142 = por %p140, %p141
      %s144 = sadd.s32 %s143, 1
      %p147 = scmp.eq.s32.totalorder %s20, 1
      %p148 = scmp.ne.s32.totalorder %s143, %s145
      %p149 = scmp.eq.s32.totalorder %s20, 0
      %p150 = por %p148, %p149
      %p151 = scmp.ne.s32.totalorder %s143, %s145
      %p152 = scmp.eq.s32.totalorder %s25, 1
      %p153 = por %p151, %p152
      %p154 = scmp.ne.s32.totalorder %s145, %s146
      %p155 = scmp.eq.s32.totalorder %s25, 0
      %p156 = por %p154, %p155
      %p157 = scmp.ne.s32.totalorder %s145, %s146
      %p158 = scmp.eq.s32.totalorder %s26, 1
      %p159 = por %p157, %p158
      %p161 = scmp.ne.s32.totalorder %s146, %s160
      %p162 = scmp.eq.s32.totalorder %s26, 0
      %p163 = por %p161, %p162
      %s165 = sadd.s32 %s164, 1
      %p168 = scmp.eq.s32.totalorder %s20, 1
      %p169 = scmp.ne.s32.totalorder %s164, %s166
      %p170 = scmp.eq.s32.totalorder %s20, 0
      %p171 = por %p169, %p170
      %p172 = scmp.ne.s32.totalorder %s164, %s166
      %p173 = scmp.eq.s32.totalorder %s25, 1
      %p174 = por %p172, %p173
      %p175 = scmp.ne.s32.totalorder %s166, %s167
      %p176 = scmp.eq.s32.totalorder %s25, 0
      %p177 = por %p175, %p176
      %p178 = scmp.ne.s32.totalorder %s166, %s167
      %p179 = scmp.eq.s32.totalorder %s26, 1
      %p180 = por %p178, %p179
      %p182 = scmp.ne.s32.totalorder %s167, %s181
      %p183 = scmp.eq.s32.totalorder %s26, 0
      %p184 = por %p182, %p183
      %s186 = sadd.s32 %s185, 1
      %p189 = scmp.eq.s32.totalorder %s20, 1
      %p190 = scmp.ne.s32.totalorder %s185, %s187
      %p191 = scmp.eq.s32.totalorder %s20, 0
      %p192 = por %p190, %p191
      %p193 = scmp.ne.s32.totalorder %s185, %s187
      %p194 = scmp.eq.s32.totalorder %s25, 1
      %p195 = por %p193, %p194
      %p196 = scmp.ne.s32.totalorder %s187, %s188
      %p197 = scmp.eq.s32.totalorder %s25, 0
      %p198 = por %p196, %p197
      %p199 = scmp.ne.s32.totalorder %s187, %s188
      %p200 = scmp.eq.s32.totalorder %s26, 1
      %p201 = por %p199, %p200
      %p203 = scmp.ne.s32.totalorder %s188, %s202
      %p204 = scmp.eq.s32.totalorder %s26, 0
      %p205 = por %p203, %p204
      %s207 = sadd.s32 %s206, 1
      %p210 = scmp.eq.s32.totalorder %s20, 1
      %p211 = scmp.ne.s32.totalorder %s206, %s208
      %p212 = scmp.eq.s32.totalorder %s20, 0
      %p213 = por %p211, %p212
      %p214 = scmp.ne.s32.totalorder %s206, %s208
      %p215 = scmp.eq.s32.totalorder %s25, 1
      %p216 = por %p214, %p215
      %p217 = scmp.ne.s32.totalorder %s208, %s209
      %p218 = scmp.eq.s32.totalorder %s25, 0
      %p219 = por %p217, %p218
      %p220 = scmp.ne.s32.totalorder %s208, %s209
      %p221 = scmp.eq.s32.totalorder %s26, 1
      %p222 = por %p220, %p221
      %p224 = scmp.ne.s32.totalorder %s209, %s223
      %p225 = scmp.eq.s32.totalorder %s26, 0
      %p226 = por %p224, %p225
      %s228 = sadd.s32 %s227, 1
      %p231 = scmp.eq.s32.totalorder %s20, 1
      %p232 = scmp.ne.s32.totalorder %s227, %s229
      %p233 = scmp.eq.s32.totalorder %s20, 0
      %p234 = por %p232, %p233
      %p235 = scmp.ne.s32.totalorder %s227, %s229
      %p236 = scmp.eq.s32.totalorder %s25, 1
      %p237 = por %p235, %p236
      %p238 = scmp.ne.s32.totalorder %s229, %s230
      %p239 = scmp.eq.s32.totalorder %s25, 0
      %p240 = por %p238, %p239
      %p241 = scmp.ne.s32.totalorder %s229, %s230
      %p242 = scmp.eq.s32.totalorder %s26, 1
      %p243 = por %p241, %p242
      %p245 = scmp.ne.s32.totalorder %s230, %s244
      %p246 = scmp.eq.s32.totalorder %s26, 0
      %p247 = por %p245, %p246
      %s249 = sadd.s32 %s248, 1
      %p252 = scmp.eq.s32.totalorder %s20, 1
      %p253 = scmp.ne.s32.totalorder %s248, %s250
      %p254 = scmp.eq.s32.totalorder %s20, 0
      %p255 = por %p253, %p254
      %p256 = scmp.ne.s32.totalorder %s248, %s250
      %p257 = scmp.eq.s32.totalorder %s25, 1
      %p258 = por %p256, %p257
      %p259 = scmp.ne.s32.totalorder %s250, %s251
      %p260 = scmp.eq.s32.totalorder %s25, 0
      %p261 = por %p259, %p260
      %p262 = scmp.ne.s32.totalorder %s250, %s251
      %p263 = scmp.eq.s32.totalorder %s26, 1
      %p264 = por %p262, %p263
      %p266 = scmp.ne.s32.totalorder %s251, %s265
      %p267 = scmp.eq.s32.totalorder %s26, 0
      %p268 = por %p266, %p267
      %s269 = ssub.s32 %s20, %s27
      %p270 = scmp.eq.s32.totalorder %s269, 0
      %s272 = sadd.s32 %s271, 1
      %s273 = scalar_select %p270, %s271, %s272
      %p276 = pneg %p270
      %p277 = scmp.eq.s32.totalorder %s20, 1
      %p278 = por %p276, %p277
      %p279 = scmp.ne.s32.totalorder %s271, %s274
      %p280 = scmp.eq.s32.totalorder %s20, 0
      %p281 = por %p279, %p280
      %p282 = scmp.ne.s32.totalorder %s271, %s274
      %p283 = scmp.eq.s32.totalorder %s25, 1
      %p284 = por %p282, %p283
      %p285 = scmp.ne.s32.totalorder %s274, %s275
      %p286 = scmp.eq.s32.totalorder %s25, 0
      %p287 = por %p285, %p286
      %p288 = scmp.ne.s32.totalorder %s274, %s275
      %p289 = scmp.eq.s32.totalorder %s26, 1
      %p290 = por %p288, %p289
      %p292 = scmp.ne.s32.totalorder %s275, %s291
      %p293 = scmp.eq.s32.totalorder %s26, 0
      %p294 = por %p292, %p293
      %p295 = scmp.le.s32.totalorder 1, %s20
      %p296 = scmp.lt.s32.totalorder %s20, 3
      %p297 = pnand %p295, %p296
      %p298 = pneg %p297
      // Predicated region
      $region9: #{decoder_layer.1} parent=5 // pred_check
        _
      $region10: #{decoder_layer.1} parent=5 // pred_check_branch
        %300 = sbr.rel (%p297) target = $region12
      $region11: #{decoder_layer.1} parent=5 // pred_region
        %s301 = ssub.s32 %s20, 1
        // Predicated region
        $region13: #{decoder_layer.1} parent=11 // pred_check
          %p302 = pneg %p93
        $region14: #{decoder_layer.1} parent=11 // pred_check_branch
          %304 = sbr.rel (%p302) target = $region16
        $region15: #{decoder_layer.1} parent=11 // pred_region
          _
        $region16: #{decoder_layer.1} parent=11 // pred_fallthru
          _
        // Predicated region
        $region17: #{decoder_layer.1} parent=11 // pred_check
          %p305 = pneg %p114
        $region18: #{decoder_layer.1} parent=11 // pred_check_branch
          %307 = sbr.rel (%p305) target = $region20
        $region19: #{decoder_layer.1} parent=11 // pred_region
          _
        $region20: #{decoder_layer.1} parent=11 // pred_fallthru
          _
        // Predicated region
        $region21: #{decoder_layer.1} parent=11 // pred_check
          %p308 = pneg %p135
        $region22: #{decoder_layer.1} parent=11 // pred_check_branch
          %310 = sbr.rel (%p308) target = $region24
        $region23: #{decoder_layer.1} parent=11 // pred_region
          _
        $region24: #{decoder_layer.1} parent=11 // pred_fallthru
          _
        // Predicated region
        $region25: #{decoder_layer.1} parent=11 // pred_check
          %p311 = pneg %p156
        $region26: #{decoder_layer.1} parent=11 // pred_check_branch
          %313 = sbr.rel (%p311) target = $region28
        $region27: #{decoder_layer.1} parent=11 // pred_region
          _
        $region28: #{decoder_layer.1} parent=11 // pred_fallthru
          _
        // Predicated region
        $region29: #{decoder_layer.1} parent=11 // pred_check
          %p314 = pneg %p177
        $region30: #{decoder_layer.1} parent=11 // pred_check_branch
          %316 = sbr.rel (%p314) target = $region32
        $region31: #{decoder_layer.1} parent=11 // pred_region
          _
        $region32: #{decoder_layer.1} parent=11 // pred_fallthru
          _
        // Predicated region
        $region33: #{decoder_layer.1} parent=11 // pred_check
          %p317 = pneg %p198
        $region34: #{decoder_layer.1} parent=11 // pred_check_branch
          %319 = sbr.rel (%p317) target = $region36
        $region35: #{decoder_layer.1} parent=11 // pred_region
          _
        $region36: #{decoder_layer.1} parent=11 // pred_fallthru
          _
        // Predicated region
        $region37: #{decoder_layer.1} parent=11 // pred_check
          %p320 = pneg %p219
        $region38: #{decoder_layer.1} parent=11 // pred_check_branch
          %322 = sbr.rel (%p320) target = $region40
        $region39: #{decoder_layer.1} parent=11 // pred_region
          _
        $region40: #{decoder_layer.1} parent=11 // pred_fallthru
          _
        // Predicated region
        $region41: #{decoder_layer.1} parent=11 // pred_check
          %p323 = pneg %p240
        $region42: #{decoder_layer.1} parent=11 // pred_check_branch
          %325 = sbr.rel (%p323) target = $region44
        $region43: #{decoder_layer.1} parent=11 // pred_region
          _
        $region44: #{decoder_layer.1} parent=11 // pred_fallthru
          _
        // Predicated region
        $region45: #{decoder_layer.1} parent=11 // pred_check
          %p326 = pneg %p261
        $region46: #{decoder_layer.1} parent=11 // pred_check_branch
          %328 = sbr.rel (%p326) target = $region48
        $region47: #{decoder_layer.1} parent=11 // pred_region
          _
        $region48: #{decoder_layer.1} parent=11 // pred_fallthru
          _
      $region12: #{decoder_layer.1} parent=5 // pred_fallthru
        _
      %p329 = scmp.lt.s32.totalorder %s20, 2
      // Predicated region
      $region49: #{decoder_layer.1} parent=5 // pred_check
        %p330 = pneg %p329
      $region50: #{decoder_layer.1} parent=5 // pred_check_branch
        %332 = sbr.rel (%p330) target = $region52
      $region51: #{decoder_layer.1} parent=5 // pred_region
        // Predicated region
        $region53: #{decoder_layer.1} parent=51 // pred_check
          %p333 = pneg %p40
        $region54: #{decoder_layer.1} parent=51 // pred_check_branch
          %335 = sbr.rel (%p333) target = $region56
        $region55: #{decoder_layer.1} parent=51 // pred_region
          %p336 = scmp.lt.s32.totalorder %s20, 1
          %s337 = scalar_select %p336, %s20, 1
          %s338 = smul.addr %s337, 8
          %s339 = scalar_lea.vmem %s0, %s338
        $region56: #{decoder_layer.1} parent=51 // pred_fallthru
          _
        // Predicated region
        $region57: #{decoder_layer.1} parent=51 // pred_check
          %p340 = pneg %p66
        $region58: #{decoder_layer.1} parent=51 // pred_check_branch
          %342 = sbr.rel (%p340) target = $region60
        $region59: #{decoder_layer.1} parent=51 // pred_region
          %p343 = scmp.lt.s32.totalorder %s20, 1
          %s344 = scalar_select %p343, %s20, 1
          %s345 = smul.addr %s344, 8
          %s346 = scalar_lea.vmem %s1, %s345
        $region60: #{decoder_layer.1} parent=51 // pred_fallthru
          _
      $region52: #{decoder_layer.1} parent=5 // pred_fallthru
        _
      %p347 = scmp.le.s32.totalorder 1, %s20
      %p348 = scmp.lt.s32.totalorder %s20, 3
      %p349 = pnand %p347, %p348
      %p350 = pneg %p349
      // Predicated region
      $region61: #{decoder_layer.1} parent=5 // pred_check
        _
      $region62: #{decoder_layer.1} parent=5 // pred_check_branch
        %352 = sbr.rel (%p349) target = $region64
      $region63: #{decoder_layer.1} parent=5 // pred_region
        %s353 = ssub.s32 %s20, 1
        %p354 = scmp.lt.s32.totalorder %s25, 1
        %s355 = scalar_select %p354, %s25, 1
        %s356 = smul.addr %s355, 8
        %s357 = scalar_lea.vmem %s0, %s356
        %p358 = pneg %p46
        %p359 = pneg %p43
        %p360 = scmp.lt.s32.totalorder %s25, 1
        %s361 = scalar_select %p360, %s25, 1
        %s362 = smul.addr %s361, 8
        %s363 = scalar_lea.vmem %s1, %s362
        %p364 = pneg %p72
        %p365 = pneg %p69
        %p366 = pneg %p93
        %p367 = pneg %p90
        %p368 = pneg %p114
        %p369 = pneg %p111
        %p370 = pneg %p135
        %p371 = pneg %p132
        %p372 = pneg %p156
        %p373 = pneg %p153
        %p374 = pneg %p177
        %p375 = pneg %p174
        %p376 = pneg %p198
        %p377 = pneg %p195
        %p378 = pneg %p219
        %p379 = pneg %p216
        %p380 = pneg %p240
        %p381 = pneg %p237
        %p382 = pneg %p261
        %p383 = pneg %p258
        %p384 = pneg %p287
        %p385 = pneg %p284
        %s386 = sand.u32 %s274, 1
        %s387 = scalar_lea.sflag [#allocation4], %s386
        %s388 = sand.u32 %s274, 1
        %s389 = smul.addr %s388, 8
        %s390 = scalar_lea.vmem [#allocation3], %s389
        %p391 = scmp.lt.s32.totalorder %s25, 1
        %s392 = scalar_select %p391, %s25, 1
        %s393 = smul.addr %s392, 8
        %s394 = scalar_lea.vmem %s0, %s393
        %p395 = scmp.lt.s32.totalorder %s25, 1
        %s396 = scalar_select %p395, %s25, 1
        %s397 = smul.addr %s396, 8
        %s398 = scalar_lea.vmem %s1, %s397
        %v399 = vld [vmem:[%s394] sm:$0xff]
        %v400 = vld [vmem:[%s398] sm:$0xff]
        %v401 = vld [vmem:[%s10] sm:$0x3f]
        %v402 = vld [vmem:[%s2] sm:$0xff]
        %v403 = vld [vmem:[%s2 + $0x8] sm:$0xff]
        %v404 = vld [vmem:[%s2 + $0x10] sm:$0xff]
        %v405 = vld [vmem:[%s2 + $0x18] sm:$0xff]
        %v406 = vld [vmem:[%s3] sm:$0x1]
        %v408 = vperm.slane %v406, 0
        %vm410 = vcmask 261120
        %v412 = vsel %vm410, %v399, 0
        %414 = vmatpush.msra.mxu0 0.0
        %415 = vmatpush.msra.mxu0 0.0
        %416 = vmatpush.msra.mxu0 0.0
        %417 = vmatpush.msra.mxu0 0.0
        %418 = vmatpush.msra.mxu0 0.0
        %419 = vmatpush.msra.mxu0 0.0
        %420 = vmatpush.msra.mxu0 0.0
        %421 = vmatpush.msra.mxu0 0.0
        %422 = vmatpush.msra.mxu0 0.0
        %423 = vmatpush.msra.mxu0 0.0
        %424 = vmatpush.msra.mxu0 0.0
        %425 = vmatpush.msra.mxu0 0.0
        %426 = vmatpush.msra.mxu0 %v405
        %427 = vmatpush.msra.mxu0 %v404
        %428 = vmatpush.msra.mxu0 %v403
        %429 = vmatpush.msra.mxu0 %v402
        %430 = vmatmul.f32.gmra.mxu0 %v412
        %v431 = vpop.f32.mrf.mxu0
        %v432 = vadd.f32 %v408, %v431
        %433 = vdwg.mxu0
        %435 = vrot.lane.b32.xlu0 %v432, 120
        %v436 = vpop.permute.xlu0 %435
        %437 = vrot.lane.b32.xlu0 %v432, 112
        %v438 = vpop.permute.xlu0 %437
        %439 = vrot.lane.b32.xlu0 %v432, 104
        %v440 = vpop.permute.xlu0 %439
        %441 = vrot.lane.b32.xlu0 %v432, 96
        %v442 = vpop.permute.xlu0 %441
        %vm443 = vcmask 64512
        %v444 = vsel %vm443, %v432, 0
        %v446 = vsel %vm443, %v442, 0
        %448 = vmatpush.xpose.msra.mxu0 0.0
        %449 = vmatpush.xpose.msra.mxu0 0.0
        %450 = vmatpush.xpose.msra.mxu0 0.0
        %451 = vmatpush.xpose.msra.mxu0 0.0
        %452 = vmatpush.xpose.msra.mxu0 0.0
        %453 = vmatpush.xpose.msra.mxu0 0.0
        %454 = vmatpush.xpose.msra.mxu0 0.0
        %455 = vmatpush.xpose.msra.mxu0 0.0
        %456 = vmatpush.xpose.msra.mxu0 0.0
        %457 = vmatpush.xpose.msra.mxu0 0.0
        %458 = vmatpush.xpose.msra.mxu0 0.0
        %459 = vmatpush.xpose.msra.mxu0 0.0
        %460 = vmatpush.xpose.msra.mxu0 0.0
        %461 = vmatpush.xpose.msra.mxu0 0.0
        %462 = vmatpush.xpose.msra.mxu0 0.0
        %463 = vmatpush.xpose.msra.mxu0 %v446
        %464 = vmatmul.f32.gmra.mxu0 %v444
        %v465 = vpop.f32.mrf.mxu0
        %v466 = vadd.f32 0.0, %v465
        %467 = vdwg.mxu0
        %468 = vrot.lane.b32.xlu0 %v436, 96
        %v469 = vpop.permute.xlu0 %468
        %v470 = vsel %vm443, %v436, 0
        %v472 = vsel %vm443, %v469, 0
        %474 = vmatpush.xpose.msra.mxu0 0.0
        %475 = vmatpush.xpose.msra.mxu0 0.0
        %476 = vmatpush.xpose.msra.mxu0 0.0
        %477 = vmatpush.xpose.msra.mxu0 0.0
        %478 = vmatpush.xpose.msra.mxu0 0.0
        %479 = vmatpush.xpose.msra.mxu0 0.0
        %480 = vmatpush.xpose.msra.mxu0 0.0
        %481 = vmatpush.xpose.msra.mxu0 0.0
        %482 = vmatpush.xpose.msra.mxu0 0.0
        %483 = vmatpush.xpose.msra.mxu0 0.0
        %484 = vmatpush.xpose.msra.mxu0 0.0
        %485 = vmatpush.xpose.msra.mxu0 0.0
        %486 = vmatpush.xpose.msra.mxu0 0.0
        %487 = vmatpush.xpose.msra.mxu0 0.0
        %488 = vmatpush.xpose.msra.mxu0 0.0
        %489 = vmatpush.xpose.msra.mxu0 %v472
        %490 = vmatmul.f32.gmra.mxu0 %v470
        %v491 = vpop.f32.mrf.mxu0
        %v492 = vadd.f32 0.0, %v491
        %493 = vdwg.mxu0
        %494 = vrot.lane.b32.xlu0 %v438, 96
        %v495 = vpop.permute.xlu0 %494
        %v496 = vsel %vm443, %v438, 0
        %v498 = vsel %vm443, %v495, 0
        %500 = vmatpush.xpose.msra.mxu0 0.0
        %501 = vmatpush.xpose.msra.mxu0 0.0
        %502 = vmatpush.xpose.msra.mxu0 0.0
        %503 = vmatpush.xpose.msra.mxu0 0.0
        %504 = vmatpush.xpose.msra.mxu0 0.0
        %505 = vmatpush.xpose.msra.mxu0 0.0
        %506 = vmatpush.xpose.msra.mxu0 0.0
        %507 = vmatpush.xpose.msra.mxu0 0.0
        %508 = vmatpush.xpose.msra.mxu0 0.0
        %509 = vmatpush.xpose.msra.mxu0 0.0
        %510 = vmatpush.xpose.msra.mxu0 0.0
        %511 = vmatpush.xpose.msra.mxu0 0.0
        %512 = vmatpush.xpose.msra.mxu0 0.0
        %513 = vmatpush.xpose.msra.mxu0 0.0
        %514 = vmatpush.xpose.msra.mxu0 0.0
        %515 = vmatpush.xpose.msra.mxu0 %v498
        %516 = vmatmul.f32.gmra.mxu0 %v496
        %v517 = vpop.f32.mrf.mxu0
        %v518 = vadd.f32 0.0, %v517
        %519 = vdwg.mxu0
        %520 = vrot.lane.b32.xlu0 %v440, 96
        %v521 = vpop.permute.xlu0 %520
        %v522 = vsel %vm443, %v440, 0
        %v524 = vsel %vm443, %v521, 0
        %526 = vmatpush.xpose.msra.mxu0 0.0
        %527 = vmatpush.xpose.msra.mxu0 0.0
        %528 = vmatpush.xpose.msra.mxu0 0.0
        %529 = vmatpush.xpose.msra.mxu0 0.0
        %530 = vmatpush.xpose.msra.mxu0 0.0
        %531 = vmatpush.xpose.msra.mxu0 0.0
        %532 = vmatpush.xpose.msra.mxu0 0.0
        %533 = vmatpush.xpose.msra.mxu0 0.0
        %534 = vmatpush.xpose.msra.mxu0 0.0
        %535 = vmatpush.xpose.msra.mxu0 0.0
        %536 = vmatpush.xpose.msra.mxu0 0.0
        %537 = vmatpush.xpose.msra.mxu0 0.0
        %538 = vmatpush.xpose.msra.mxu0 0.0
        %539 = vmatpush.xpose.msra.mxu0 0.0
        %540 = vmatpush.xpose.msra.mxu0 0.0
        %541 = vmatpush.xpose.msra.mxu0 %v524
        %542 = vmatmul.f32.gmra.mxu0 %v522
        %v543 = vpop.f32.mrf.mxu0
        %v544 = vadd.f32 0.0, %v543
        %545 = vdwg.mxu0
        %v546 = vmul.f32 %v466, 0.35355338
        %v547 = vmul.f32 %v492, 0.35355338
        %v548 = vmul.f32 %v518, 0.35355338
        %v549 = vmul.f32 %v544, 0.35355338
        %v550 = vsel %vm443, %v546, -inf
        %551 = vmax.xlane.f32.xlu0 %v550
        %v552 = vpop.xlane.xlu0 %551
        %v553 = vsel %vm443, %v547, -inf
        %554 = vmax.xlane.f32.xlu0 %v553
        %v555 = vpop.xlane.xlu0 %554
        %v556 = vsel %vm443, %v548, -inf
        %557 = vmax.xlane.f32.xlu0 %v556
        %v558 = vpop.xlane.xlu0 %557
        %v559 = vsel %vm443, %v549, -inf
        %560 = vmax.xlane.f32.xlu0 %v559
        %v561 = vpop.xlane.xlu0 %560
        %v562 = vsub.f32 %v546, %v552
        %v563 = vsub.f32 %v547, %v555
        %v564 = vsub.f32 %v548, %v558
        %v565 = vsub.f32 %v549, %v561
        %v566 = vmul.f32 %v562, 1.442695
        %v567 = vpow.pop %v566
        %v568 = vmul.f32 %v563, 1.442695
        %v569 = vpow.pop %v568
        %v570 = vmul.f32 %v564, 1.442695
        %v571 = vpow.pop %v570
        %v572 = vmul.f32 %v565, 1.442695
        %v573 = vpow.pop %v572
        %v574 = vsel %vm443, %v567, 0.0
        %575 = vadd.xlane.f32.xlu0 %v574
        %v576 = vpop.xlane.xlu0 %575
        %v577 = vsel %vm443, %v569, 0.0
        %578 = vadd.xlane.f32.xlu0 %v577
        %v579 = vpop.xlane.xlu0 %578
        %v580 = vsel %vm443, %v571, 0.0
        %581 = vadd.xlane.f32.xlu0 %v580
        %v582 = vpop.xlane.xlu0 %581
        %v583 = vsel %vm443, %v573, 0.0
        %584 = vadd.xlane.f32.xlu0 %v583
        %v585 = vpop.xlane.xlu0 %584
        %v586 = vrcp.pop %v576
        %v587 = vrcp.pop %v579
        %v588 = vrcp.pop %v582
        %v589 = vrcp.pop %v585
        %v590 = vmul.f32 %v567, %v586
        %v591 = vmul.f32 %v569, %v587
        %v592 = vmul.f32 %v571, %v588
        %v593 = vmul.f32 %v573, %v589
        %594 = vrot.lane.b32.xlu0 %v432, 64
        %v595 = vpop.permute.xlu0 %594
        %v598 = vsel %vm443, %v590, 0
        %600 = vmatpush.msra.mxu0 0.0
        %601 = vmatpush.msra.mxu0 0.0
        %602 = vmatpush.msra.mxu0 0.0
        %603 = vmatpush.msra.mxu0 0.0
        %604 = vmatpush.msra.mxu0 0.0
        %605 = vmatpush.msra.mxu0 0.0
        %606 = vmatpush.msra.mxu0 0.0
        %607 = vmatpush.msra.mxu0 0.0
        %608 = vmatpush.msra.mxu0 0.0
        %609 = vmatpush.msra.mxu0 0.0
        %610 = vmatpush.msra.mxu0 0.0
        %611 = vmatpush.msra.mxu0 0.0
        %612 = vmatpush.msra.mxu0 0.0
        %613 = vmatpush.msra.mxu0 0.0
        %614 = vmatpush.msra.mxu0 0.0
        %615 = vmatpush.msra.mxu0 %v595
        %616 = vmatmul.f32.gmra.mxu0 %v598
        %v617 = vpop.f32.mrf.mxu0
        %v618 = vadd.f32 0.0, %v617
        %619 = vdwg.mxu0
        %620 = vrot.lane.b32.xlu0 %v436, 64
        %v621 = vpop.permute.xlu0 %620
        %v624 = vsel %vm443, %v591, 0
        %626 = vmatpush.msra.mxu0 0.0
        %627 = vmatpush.msra.mxu0 0.0
        %628 = vmatpush.msra.mxu0 0.0
        %629 = vmatpush.msra.mxu0 0.0
        %630 = vmatpush.msra.mxu0 0.0
        %631 = vmatpush.msra.mxu0 0.0
        %632 = vmatpush.msra.mxu0 0.0
        %633 = vmatpush.msra.mxu0 0.0
        %634 = vmatpush.msra.mxu0 0.0
        %635 = vmatpush.msra.mxu0 0.0
        %636 = vmatpush.msra.mxu0 0.0
        %637 = vmatpush.msra.mxu0 0.0
        %638 = vmatpush.msra.mxu0 0.0
        %639 = vmatpush.msra.mxu0 0.0
        %640 = vmatpush.msra.mxu0 0.0
        %641 = vmatpush.msra.mxu0 %v621
        %642 = vmatmul.f32.gmra.mxu0 %v624
        %v643 = vpop.f32.mrf.mxu0
        %v644 = vadd.f32 0.0, %v643
        %645 = vdwg.mxu0
        %646 = vrot.lane.b32.xlu0 %v438, 64
        %v647 = vpop.permute.xlu0 %646
        %v650 = vsel %vm443, %v592, 0
        %652 = vmatpush.msra.mxu0 0.0
        %653 = vmatpush.msra.mxu0 0.0
        %654 = vmatpush.msra.mxu0 0.0
        %655 = vmatpush.msra.mxu0 0.0
        %656 = vmatpush.msra.mxu0 0.0
        %657 = vmatpush.msra.mxu0 0.0
        %658 = vmatpush.msra.mxu0 0.0
        %659 = vmatpush.msra.mxu0 0.0
        %660 = vmatpush.msra.mxu0 0.0
        %661 = vmatpush.msra.mxu0 0.0
        %662 = vmatpush.msra.mxu0 0.0
        %663 = vmatpush.msra.mxu0 0.0
        %664 = vmatpush.msra.mxu0 0.0
        %665 = vmatpush.msra.mxu0 0.0
        %666 = vmatpush.msra.mxu0 0.0
        %667 = vmatpush.msra.mxu0 %v647
        %668 = vmatmul.f32.gmra.mxu0 %v650
        %v669 = vpop.f32.mrf.mxu0
        %v670 = vadd.f32 0.0, %v669
        %671 = vdwg.mxu0
        %672 = vrot.lane.b32.xlu0 %v440, 64
        %v673 = vpop.permute.xlu0 %672
        %v676 = vsel %vm443, %v593, 0
        %678 = vmatpush.msra.mxu0 0.0
        %679 = vmatpush.msra.mxu0 0.0
        %680 = vmatpush.msra.mxu0 0.0
        %681 = vmatpush.msra.mxu0 0.0
        %682 = vmatpush.msra.mxu0 0.0
        %683 = vmatpush.msra.mxu0 0.0
        %684 = vmatpush.msra.mxu0 0.0
        %685 = vmatpush.msra.mxu0 0.0
        %686 = vmatpush.msra.mxu0 0.0
        %687 = vmatpush.msra.mxu0 0.0
        %688 = vmatpush.msra.mxu0 0.0
        %689 = vmatpush.msra.mxu0 0.0
        %690 = vmatpush.msra.mxu0 0.0
        %691 = vmatpush.msra.mxu0 0.0
        %692 = vmatpush.msra.mxu0 0.0
        %693 = vmatpush.msra.mxu0 %v673
        %694 = vmatmul.f32.gmra.mxu0 %v676
        %v695 = vpop.f32.mrf.mxu0
        %v696 = vadd.f32 0.0, %v695
        %697 = vdwg.mxu0
        %698 = vst.msk [vmem:[#allocation2] sm:$0xff] %vm443, %v618
        %700 = vrot.lane.b32.xlu0 %v644, 8
        %v701 = vpop.permute.xlu0 %700
        %vm703 = vcmask 130112
        %704 = vst.msk [vmem:[#allocation2] sm:$0xff] %vm703, %v701
        %706 = vrot.lane.b32.xlu0 %v670, 16
        %v707 = vpop.permute.xlu0 %706
        %vm709 = vcmask 195712
        %710 = vst.msk [vmem:[#allocation2] sm:$0xff] %vm709, %v707
        %712 = vrot.lane.b32.xlu0 %v696, 24
        %v713 = vpop.permute.xlu0 %712
        %vm715 = vcmask 261312
        %716 = vst.msk [vmem:[#allocation2] sm:$0xff] %vm715, %v713
        %v717 = vld [vmem:[#allocation2] sm:$0xff]
        %722 = vrot.lane.b32.xlu0 %v402, 32
        %v723 = vpop.permute.xlu0 %722
        %724 = vrot.lane.b32.xlu0 %v403, 32
        %v725 = vpop.permute.xlu0 %724
        %726 = vrot.lane.b32.xlu0 %v404, 32
        %v727 = vpop.permute.xlu0 %726
        %728 = vrot.lane.b32.xlu0 %v405, 32
        %v729 = vpop.permute.xlu0 %728
        %734 = vrot.lane.b32.xlu0 %v408, 32
        %v735 = vpop.permute.xlu0 %734
        %v738 = vsel %vm410, %v717, 0
        %740 = vmatpush.msra.mxu0 0.0
        %741 = vmatpush.msra.mxu0 0.0
        %742 = vmatpush.msra.mxu0 0.0
        %743 = vmatpush.msra.mxu0 0.0
        %744 = vmatpush.msra.mxu0 0.0
        %745 = vmatpush.msra.mxu0 0.0
        %746 = vmatpush.msra.mxu0 0.0
        %747 = vmatpush.msra.mxu0 0.0
        %748 = vmatpush.msra.mxu0 0.0
        %749 = vmatpush.msra.mxu0 0.0
        %750 = vmatpush.msra.mxu0 0.0
        %751 = vmatpush.msra.mxu0 0.0
        %752 = vmatpush.msra.mxu0 %v729
        %753 = vmatpush.msra.mxu0 %v727
        %754 = vmatpush.msra.mxu0 %v725
        %755 = vmatpush.msra.mxu0 %v723
        %756 = vmatmul.f32.gmra.mxu0 %v738
        %v757 = vpop.f32.mrf.mxu0
        %v758 = vadd.f32 %v735, %v757
        %759 = vdwg.mxu0
        %v760 = vadd.f32 %v399, %v758
        %v761 = vsel %vm410, %v760, 0.0
        %762 = vadd.xlane.f32.xlu0 %v761
        %v763 = vpop.xlane.xlu0 %762
        %v764 = vrcp.pop 32.0
        %v765 = vmul.f32 32.0, %v764
        %v766 = vsub.f32 1.0, %v765
        %v767 = vmul.f32 %v764, %v766
        %v768 = vadd.f32 %v764, %v767
        %vm769 = vweird.f32 %v764
        %v770 = vsel %vm769, %v764, %v768
        %v771 = vmul.f32 %v763, %v770
        %v772 = vsub.f32 %v760, %v771
        %v773 = vmul.f32 %v772, %v772
        %v774 = vsel %vm410, %v773, 0.0
        %775 = vadd.xlane.f32.xlu0 %v774
        %v776 = vpop.xlane.xlu0 %775
        %v777 = vmul.f32 %v776, %v770
        %v778 = vadd.f32 %v777, 1e-05
        %v779 = vrsqrt.pop %v778
        %v780 = vmul.f32 %v779, %v778
        %v781 = vmul.f32 %v780, %v779
        %v782 = vmul.f32 0.5, %v781
        %v783 = vsub.f32 1.5, %v782
        %v784 = vmul.f32 %v779, %v783
        %vm785 = vweird.f32 %v778
        %vm786 = vweird.f32 %v779
        %vm787 = vmor %vm785, %vm786
        %v788 = vsel %vm787, %v779, %v784
        %v789 = vmul.f32 %v772, %v788
        %v790 = vperm.slane %v401, 0
        %v791 = vmul.f32 %v789, %v790
        %v792 = vperm.slane %v401, 1
        %v793 = vadd.f32 %v791, %v792
        %v794 = vld [vmem:[%s4] sm:$0xff]
        %v795 = vld [vmem:[%s4 + $0x8] sm:$0xff]
        %v796 = vld [vmem:[%s4 + $0x10] sm:$0xff]
        %v797 = vld [vmem:[%s4 + $0x18] sm:$0xff]
        %v798 = vld [vmem:[%s5] sm:$0x1]
        %v800 = vperm.slane %v798, 0
        %v803 = vsel %vm410, %v793, 0
        %805 = vmatpush.msra.mxu0 0.0
        %806 = vmatpush.msra.mxu0 0.0
        %807 = vmatpush.msra.mxu0 0.0
        %808 = vmatpush.msra.mxu0 0.0
        %809 = vmatpush.msra.mxu0 0.0
        %810 = vmatpush.msra.mxu0 0.0
        %811 = vmatpush.msra.mxu0 0.0
        %812 = vmatpush.msra.mxu0 0.0
        %813 = vmatpush.msra.mxu0 0.0
        %814 = vmatpush.msra.mxu0 0.0
        %815 = vmatpush.msra.mxu0 0.0
        %816 = vmatpush.msra.mxu0 0.0
        %817 = vmatpush.msra.mxu0 %v797
        %818 = vmatpush.msra.mxu0 %v796
        %819 = vmatpush.msra.mxu0 %v795
        %820 = vmatpush.msra.mxu0 %v794
        %821 = vmatmul.f32.gmra.mxu0 %v803
        %v822 = vpop.f32.mrf.mxu0
        %v823 = vadd.f32 %v800, %v822
        %824 = vdwg.mxu0
        %v826 = vsel %vm410, %v400, 0
        %828 = vmatpush.msra.mxu0 0.0
        %829 = vmatpush.msra.mxu0 0.0
        %830 = vmatpush.msra.mxu0 0.0
        %831 = vmatpush.msra.mxu0 0.0
        %832 = vmatpush.msra.mxu0 0.0
        %833 = vmatpush.msra.mxu0 0.0
        %834 = vmatpush.msra.mxu0 0.0
        %835 = vmatpush.msra.mxu0 0.0
        %836 = vmatpush.msra.mxu0 0.0
        %837 = vmatpush.msra.mxu0 0.0
        %838 = vmatpush.msra.mxu0 0.0
        %839 = vmatpush.msra.mxu0 0.0
        %840 = vmatpush.msra.mxu0 %v797
        %841 = vmatpush.msra.mxu0 %v796
        %842 = vmatpush.msra.mxu0 %v795
        %843 = vmatpush.msra.mxu0 %v794
        %844 = vmatmul.f32.gmra.mxu0 %v826
        %v845 = vpop.f32.mrf.mxu0
        %v846 = vadd.f32 %v800, %v845
        %847 = vdwg.mxu0
        %849 = vrot.lane.b32.xlu0 %v823, 120
        %v850 = vpop.permute.xlu0 %849
        %851 = vrot.lane.b32.xlu0 %v823, 112
        %v852 = vpop.permute.xlu0 %851
        %853 = vrot.lane.b32.xlu0 %v823, 104
        %v854 = vpop.permute.xlu0 %853
        %856 = vrot.lane.b32.xlu0 %v846, 120
        %v857 = vpop.permute.xlu0 %856
        %858 = vrot.lane.b32.xlu0 %v846, 112
        %v859 = vpop.permute.xlu0 %858
        %860 = vrot.lane.b32.xlu0 %v846, 104
        %v861 = vpop.permute.xlu0 %860
        %862 = vrot.lane.b32.xlu0 %v846, 96
        %v863 = vpop.permute.xlu0 %862
        %v864 = vsel %vm443, %v823, 0
        %v866 = vsel %vm443, %v863, 0
        %868 = vmatpush.xpose.msra.mxu0 0.0
        %869 = vmatpush.xpose.msra.mxu0 0.0
        %870 = vmatpush.xpose.msra.mxu0 0.0
        %871 = vmatpush.xpose.msra.mxu0 0.0
        %872 = vmatpush.xpose.msra.mxu0 0.0
        %873 = vmatpush.xpose.msra.mxu0 0.0
        %874 = vmatpush.xpose.msra.mxu0 0.0
        %875 = vmatpush.xpose.msra.mxu0 0.0
        %876 = vmatpush.xpose.msra.mxu0 0.0
        %877 = vmatpush.xpose.msra.mxu0 0.0
        %878 = vmatpush.xpose.msra.mxu0 0.0
        %879 = vmatpush.xpose.msra.mxu0 0.0
        %880 = vmatpush.xpose.msra.mxu0 0.0
        %881 = vmatpush.xpose.msra.mxu0 0.0
        %882 = vmatpush.xpose.msra.mxu0 0.0
        %883 = vmatpush.xpose.msra.mxu0 %v866
        %884 = vmatmul.f32.gmra.mxu0 %v864
        %v885 = vpop.f32.mrf.mxu0
        %v886 = vadd.f32 0.0, %v885
        %887 = vdwg.mxu0
        %888 = vrot.lane.b32.xlu0 %v857, 96
        %v889 = vpop.permute.xlu0 %888
        %v890 = vsel %vm443, %v850, 0
        %v892 = vsel %vm443, %v889, 0
        %894 = vmatpush.xpose.msra.mxu0 0.0
        %895 = vmatpush.xpose.msra.mxu0 0.0
        %896 = vmatpush.xpose.msra.mxu0 0.0
        %897 = vmatpush.xpose.msra.mxu0 0.0
        %898 = vmatpush.xpose.msra.mxu0 0.0
        %899 = vmatpush.xpose.msra.mxu0 0.0
        %900 = vmatpush.xpose.msra.mxu0 0.0
        %901 = vmatpush.xpose.msra.mxu0 0.0
        %902 = vmatpush.xpose.msra.mxu0 0.0
        %903 = vmatpush.xpose.msra.mxu0 0.0
        %904 = vmatpush.xpose.msra.mxu0 0.0
        %905 = vmatpush.xpose.msra.mxu0 0.0
        %906 = vmatpush.xpose.msra.mxu0 0.0
        %907 = vmatpush.xpose.msra.mxu0 0.0
        %908 = vmatpush.xpose.msra.mxu0 0.0
        %909 = vmatpush.xpose.msra.mxu0 %v892
        %910 = vmatmul.f32.gmra.mxu0 %v890
        %v911 = vpop.f32.mrf.mxu0
        %v912 = vadd.f32 0.0, %v911
        %913 = vdwg.mxu0
        %914 = vrot.lane.b32.xlu0 %v859, 96
        %v915 = vpop.permute.xlu0 %914
        %v916 = vsel %vm443, %v852, 0
        %v918 = vsel %vm443, %v915, 0
        %920 = vmatpush.xpose.msra.mxu0 0.0
        %921 = vmatpush.xpose.msra.mxu0 0.0
        %922 = vmatpush.xpose.msra.mxu0 0.0
        %923 = vmatpush.xpose.msra.mxu0 0.0
        %924 = vmatpush.xpose.msra.mxu0 0.0
        %925 = vmatpush.xpose.msra.mxu0 0.0
        %926 = vmatpush.xpose.msra.mxu0 0.0
        %927 = vmatpush.xpose.msra.mxu0 0.0
        %928 = vmatpush.xpose.msra.mxu0 0.0
        %929 = vmatpush.xpose.msra.mxu0 0.0
        %930 = vmatpush.xpose.msra.mxu0 0.0
        %931 = vmatpush.xpose.msra.mxu0 0.0
        %932 = vmatpush.xpose.msra.mxu0 0.0
        %933 = vmatpush.xpose.msra.mxu0 0.0
        %934 = vmatpush.xpose.msra.mxu0 0.0
        %935 = vmatpush.xpose.msra.mxu0 %v918
        %936 = vmatmul.f32.gmra.mxu0 %v916
        %v937 = vpop.f32.mrf.mxu0
        %v938 = vadd.f32 0.0, %v937
        %939 = vdwg.mxu0
        %940 = vrot.lane.b32.xlu0 %v861, 96
        %v941 = vpop.permute.xlu0 %940
        %v942 = vsel %vm443, %v854, 0
        %v944 = vsel %vm443, %v941, 0
        %946 = vmatpush.xpose.msra.mxu0 0.0
        %947 = vmatpush.xpose.msra.mxu0 0.0
        %948 = vmatpush.xpose.msra.mxu0 0.0
        %949 = vmatpush.xpose.msra.mxu0 0.0
        %950 = vmatpush.xpose.msra.mxu0 0.0
        %951 = vmatpush.xpose.msra.mxu0 0.0
        %952 = vmatpush.xpose.msra.mxu0 0.0
        %953 = vmatpush.xpose.msra.mxu0 0.0
        %954 = vmatpush.xpose.msra.mxu0 0.0
        %955 = vmatpush.xpose.msra.mxu0 0.0
        %956 = vmatpush.xpose.msra.mxu0 0.0
        %957 = vmatpush.xpose.msra.mxu0 0.0
        %958 = vmatpush.xpose.msra.mxu0 0.0
        %959 = vmatpush.xpose.msra.mxu0 0.0
        %960 = vmatpush.xpose.msra.mxu0 0.0
        %961 = vmatpush.xpose.msra.mxu0 %v944
        %962 = vmatmul.f32.gmra.mxu0 %v942
        %v963 = vpop.f32.mrf.mxu0
        %v964 = vadd.f32 0.0, %v963
        %965 = vdwg.mxu0
        %v966 = vmul.f32 %v886, 0.35355338
        %v967 = vmul.f32 %v912, 0.35355338
        %v968 = vmul.f32 %v938, 0.35355338
        %v969 = vmul.f32 %v964, 0.35355338
        %v970 = vsel %vm443, %v966, -inf
        %971 = vmax.xlane.f32.xlu0 %v970
        %v972 = vpop.xlane.xlu0 %971
        %v973 = vsel %vm443, %v967, -inf
        %974 = vmax.xlane.f32.xlu0 %v973
        %v975 = vpop.xlane.xlu0 %974
        %v976 = vsel %vm443, %v968, -inf
        %977 = vmax.xlane.f32.xlu0 %v976
        %v978 = vpop.xlane.xlu0 %977
        %v979 = vsel %vm443, %v969, -inf
        %980 = vmax.xlane.f32.xlu0 %v979
        %v981 = vpop.xlane.xlu0 %980
        %v982 = vsub.f32 %v966, %v972
        %v983 = vsub.f32 %v967, %v975
        %v984 = vsub.f32 %v968, %v978
        %v985 = vsub.f32 %v969, %v981
        %v986 = vmul.f32 %v982, 1.442695
        %v987 = vpow.pop %v986
        %v988 = vmul.f32 %v983, 1.442695
        %v989 = vpow.pop %v988
        %v990 = vmul.f32 %v984, 1.442695
        %v991 = vpow.pop %v990
        %v992 = vmul.f32 %v985, 1.442695
        %v993 = vpow.pop %v992
        %v994 = vsel %vm443, %v987, 0.0
        %995 = vadd.xlane.f32.xlu0 %v994
        %v996 = vpop.xlane.xlu0 %995
        %v997 = vsel %vm443, %v989, 0.0
        %998 = vadd.xlane.f32.xlu0 %v997
        %v999 = vpop.xlane.xlu0 %998
        %v1000 = vsel %vm443, %v991, 0.0
        %1001 = vadd.xlane.f32.xlu0 %v1000
        %v1002 = vpop.xlane.xlu0 %1001
        %v1003 = vsel %vm443, %v993, 0.0
        %1004 = vadd.xlane.f32.xlu0 %v1003
        %v1005 = vpop.xlane.xlu0 %1004
        %v1006 = vrcp.pop %v996
        %v1007 = vrcp.pop %v999
        %v1008 = vrcp.pop %v1002
        %v1009 = vrcp.pop %v1005
        %v1010 = vmul.f32 %v987, %v1006
        %v1011 = vmul.f32 %v989, %v1007
        %v1012 = vmul.f32 %v991, %v1008
        %v1013 = vmul.f32 %v993, %v1009
        %1014 = vrot.lane.b32.xlu0 %v846, 64
        %v1015 = vpop.permute.xlu0 %1014
        %v1018 = vsel %vm443, %v1010, 0
        %1020 = vmatpush.msra.mxu0 0.0
        %1021 = vmatpush.msra.mxu0 0.0
        %1022 = vmatpush.msra.mxu0 0.0
        %1023 = vmatpush.msra.mxu0 0.0
        %1024 = vmatpush.msra.mxu0 0.0
        %1025 = vmatpush.msra.mxu0 0.0
        %1026 = vmatpush.msra.mxu0 0.0
        %1027 = vmatpush.msra.mxu0 0.0
        %1028 = vmatpush.msra.mxu0 0.0
        %1029 = vmatpush.msra.mxu0 0.0
        %1030 = vmatpush.msra.mxu0 0.0
        %1031 = vmatpush.msra.mxu0 0.0
        %1032 = vmatpush.msra.mxu0 0.0
        %1033 = vmatpush.msra.mxu0 0.0
        %1034 = vmatpush.msra.mxu0 0.0
        %1035 = vmatpush.msra.mxu0 %v1015
        %1036 = vmatmul.f32.gmra.mxu0 %v1018
        %v1037 = vpop.f32.mrf.mxu0
        %v1038 = vadd.f32 0.0, %v1037
        %1039 = vdwg.mxu0
        %1040 = vrot.lane.b32.xlu0 %v857, 64
        %v1041 = vpop.permute.xlu0 %1040
        %v1044 = vsel %vm443, %v1011, 0
        %1046 = vmatpush.msra.mxu0 0.0
        %1047 = vmatpush.msra.mxu0 0.0
        %1048 = vmatpush.msra.mxu0 0.0
        %1049 = vmatpush.msra.mxu0 0.0
        %1050 = vmatpush.msra.mxu0 0.0
        %1051 = vmatpush.msra.mxu0 0.0
        %1052 = vmatpush.msra.mxu0 0.0
        %1053 = vmatpush.msra.mxu0 0.0
        %1054 = vmatpush.msra.mxu0 0.0
        %1055 = vmatpush.msra.mxu0 0.0
        %1056 = vmatpush.msra.mxu0 0.0
        %1057 = vmatpush.msra.mxu0 0.0
        %1058 = vmatpush.msra.mxu0 0.0
        %1059 = vmatpush.msra.mxu0 0.0
        %1060 = vmatpush.msra.mxu0 0.0
        %1061 = vmatpush.msra.mxu0 %v1041
        %1062 = vmatmul.f32.gmra.mxu0 %v1044
        %v1063 = vpop.f32.mrf.mxu0
        %v1064 = vadd.f32 0.0, %v1063
        %1065 = vdwg.mxu0
        %1066 = vrot.lane.b32.xlu0 %v859, 64
        %v1067 = vpop.permute.xlu0 %1066
        %v1070 = vsel %vm443, %v1012, 0
        %1072 = vmatpush.msra.mxu0 0.0
        %1073 = vmatpush.msra.mxu0 0.0
        %1074 = vmatpush.msra.mxu0 0.0
        %1075 = vmatpush.msra.mxu0 0.0
        %1076 = vmatpush.msra.mxu0 0.0
        %1077 = vmatpush.msra.mxu0 0.0
        %1078 = vmatpush.msra.mxu0 0.0
        %1079 = vmatpush.msra.mxu0 0.0
        %1080 = vmatpush.msra.mxu0 0.0
        %1081 = vmatpush.msra.mxu0 0.0
        %1082 = vmatpush.msra.mxu0 0.0
        %1083 = vmatpush.msra.mxu0 0.0
        %1084 = vmatpush.msra.mxu0 0.0
        %1085 = vmatpush.msra.mxu0 0.0
        %1086 = vmatpush.msra.mxu0 0.0
        %1087 = vmatpush.msra.mxu0 %v1067
        %1088 = vmatmul.f32.gmra.mxu0 %v1070
        %v1089 = vpop.f32.mrf.mxu0
        %v1090 = vadd.f32 0.0, %v1089
        %1091 = vdwg.mxu0
        %1092 = vrot.lane.b32.xlu0 %v861, 64
        %v1093 = vpop.permute.xlu0 %1092
        %v1096 = vsel %vm443, %v1013, 0
        %1098 = vmatpush.msra.mxu0 0.0
        %1099 = vmatpush.msra.mxu0 0.0
        %1100 = vmatpush.msra.mxu0 0.0
        %1101 = vmatpush.msra.mxu0 0.0
        %1102 = vmatpush.msra.mxu0 0.0
        %1103 = vmatpush.msra.mxu0 0.0
        %1104 = vmatpush.msra.mxu0 0.0
        %1105 = vmatpush.msra.mxu0 0.0
        %1106 = vmatpush.msra.mxu0 0.0
        %1107 = vmatpush.msra.mxu0 0.0
        %1108 = vmatpush.msra.mxu0 0.0
        %1109 = vmatpush.msra.mxu0 0.0
        %1110 = vmatpush.msra.mxu0 0.0
        %1111 = vmatpush.msra.mxu0 0.0
        %1112 = vmatpush.msra.mxu0 0.0
        %1113 = vmatpush.msra.mxu0 %v1093
        %1114 = vmatmul.f32.gmra.mxu0 %v1096
        %v1115 = vpop.f32.mrf.mxu0
        %v1116 = vadd.f32 0.0, %v1115
        %1117 = vdwg.mxu0
        %1118 = vst.msk [vmem:[#allocation2] sm:$0xff] %vm443, %v1038
        %1120 = vrot.lane.b32.xlu0 %v1064, 8
        %v1121 = vpop.permute.xlu0 %1120
        %1123 = vst.msk [vmem:[#allocation2] sm:$0xff] %vm703, %v1121
        %1125 = vrot.lane.b32.xlu0 %v1090, 16
        %v1126 = vpop.permute.xlu0 %1125
        %1128 = vst.msk [vmem:[#allocation2] sm:$0xff] %vm709, %v1126
        %1130 = vrot.lane.b32.xlu0 %v1116, 24
        %v1131 = vpop.permute.xlu0 %1130
        %1133 = vst.msk [vmem:[#allocation2] sm:$0xff] %vm715, %v1131
        %v1134 = vld [vmem:[#allocation2] sm:$0xff]
        %1139 = vrot.lane.b32.xlu0 %v794, 32
        %v1140 = vpop.permute.xlu0 %1139
        %1141 = vrot.lane.b32.xlu0 %v795, 32
        %v1142 = vpop.permute.xlu0 %1141
        %1143 = vrot.lane.b32.xlu0 %v796, 32
        %v1144 = vpop.permute.xlu0 %1143
        %1145 = vrot.lane.b32.xlu0 %v797, 32
        %v1146 = vpop.permute.xlu0 %1145
        %1151 = vrot.lane.b32.xlu0 %v800, 32
        %v1152 = vpop.permute.xlu0 %1151
        %v1155 = vsel %vm410, %v1134, 0
        %1157 = vmatpush.msra.mxu0 0.0
        %1158 = vmatpush.msra.mxu0 0.0
        %1159 = vmatpush.msra.mxu0 0.0
        %1160 = vmatpush.msra.mxu0 0.0
        %1161 = vmatpush.msra.mxu0 0.0
        %1162 = vmatpush.msra.mxu0 0.0
        %1163 = vmatpush.msra.mxu0 0.0
        %1164 = vmatpush.msra.mxu0 0.0
        %1165 = vmatpush.msra.mxu0 0.0
        %1166 = vmatpush.msra.mxu0 0.0
        %1167 = vmatpush.msra.mxu0 0.0
        %1168 = vmatpush.msra.mxu0 0.0
        %1169 = vmatpush.msra.mxu0 %v1146
        %1170 = vmatpush.msra.mxu0 %v1144
        %1171 = vmatpush.msra.mxu0 %v1142
        %1172 = vmatpush.msra.mxu0 %v1140
        %1173 = vmatmul.f32.gmra.mxu0 %v1155
        %v1174 = vpop.f32.mrf.mxu0
        %v1175 = vadd.f32 %v1152, %v1174
        %1176 = vdwg.mxu0
        %v1177 = vadd.f32 %v793, %v1175
        %v1178 = vsel %vm410, %v1177, 0.0
        %1179 = vadd.xlane.f32.xlu0 %v1178
        %v1180 = vpop.xlane.xlu0 %1179
        %v1181 = vmul.f32 %v1180, %v770
        %v1182 = vsub.f32 %v1177, %v1181
        %v1183 = vmul.f32 %v1182, %v1182
        %v1184 = vsel %vm410, %v1183, 0.0
        %1185 = vadd.xlane.f32.xlu0 %v1184
        %v1186 = vpop.xlane.xlu0 %1185
        %v1187 = vmul.f32 %v1186, %v770
        %v1188 = vadd.f32 %v1187, 1e-05
        %v1189 = vrsqrt.pop %v1188
        %v1190 = vmul.f32 %v1189, %v1188
        %v1191 = vmul.f32 %v1190, %v1189
        %v1192 = vmul.f32 0.5, %v1191
        %v1193 = vsub.f32 1.5, %v1192
        %v1194 = vmul.f32 %v1189, %v1193
        %vm1195 = vweird.f32 %v1188
        %vm1196 = vweird.f32 %v1189
        %vm1197 = vmor %vm1195, %vm1196
        %v1198 = vsel %vm1197, %v1189, %v1194
        %v1199 = vmul.f32 %v1182, %v1198
        %v1200 = vperm.slane %v401, 2
        %v1201 = vmul.f32 %v1199, %v1200
        %v1202 = vperm.slane %v401, 3
        %v1203 = vadd.f32 %v1201, %v1202
        %v1204 = vld [vmem:[%s6] sm:$0xff]
        %v1205 = vld [vmem:[%s6 + $0x8] sm:$0xff]
        %v1206 = vld [vmem:[%s6 + $0x10] sm:$0xff]
        %v1207 = vld [vmem:[%s6 + $0x18] sm:$0xff]
        %v1208 = vld [vmem:[%s7] sm:$0x1]
        %v1210 = vperm.slane %v1208, 0
        %v1213 = vsel %vm410, %v1203, 0
        %1215 = vmatpush.msra.mxu0 0.0
        %1216 = vmatpush.msra.mxu0 0.0
        %1217 = vmatpush.msra.mxu0 0.0
        %1218 = vmatpush.msra.mxu0 0.0
        %1219 = vmatpush.msra.mxu0 0.0
        %1220 = vmatpush.msra.mxu0 0.0
        %1221 = vmatpush.msra.mxu0 0.0
        %1222 = vmatpush.msra.mxu0 0.0
        %1223 = vmatpush.msra.mxu0 0.0
        %1224 = vmatpush.msra.mxu0 0.0
        %1225 = vmatpush.msra.mxu0 0.0
        %1226 = vmatpush.msra.mxu0 0.0
        %1227 = vmatpush.msra.mxu0 %v1207
        %1228 = vmatpush.msra.mxu0 %v1206
        %1229 = vmatpush.msra.mxu0 %v1205
        %1230 = vmatpush.msra.mxu0 %v1204
        %1231 = vmatmul.f32.gmra.mxu0 %v1213
        %v1232 = vpop.f32.mrf.mxu0
        %v1233 = vadd.f32 %v1210, %v1232
        %1234 = vdwg.mxu0
        %v1235 = vmax.f32 %v1233, 0.0
        %v1236 = vld [vmem:[%s8] sm:$0xff]
        %v1237 = vld [vmem:[%s8 + $0x8] sm:$0xff]
        %v1238 = vld [vmem:[%s8 + $0x10] sm:$0xff]
        %v1239 = vld [vmem:[%s8 + $0x18] sm:$0xff]
        %v1240 = vld [vmem:[%s8 + $0x20] sm:$0xff]
        %v1241 = vld [vmem:[%s8 + $0x28] sm:$0xff]
        %v1242 = vld [vmem:[%s8 + $0x30] sm:$0xff]
        %v1243 = vld [vmem:[%s8 + $0x38] sm:$0xff]
        %v1244 = vld [vmem:[%s9] sm:$0x1]
        %v1246 = vperm.slane %v1244, 0
        %vm1248 = vcmask 523264
        %v1250 = vsel %vm1248, %v1235, 0
        %1252 = vmatpush.msra.mxu0 0.0
        %1253 = vmatpush.msra.mxu0 0.0
        %1254 = vmatpush.msra.mxu0 0.0
        %1255 = vmatpush.msra.mxu0 0.0
        %1256 = vmatpush.msra.mxu0 0.0
        %1257 = vmatpush.msra.mxu0 0.0
        %1258 = vmatpush.msra.mxu0 0.0
        %1259 = vmatpush.msra.mxu0 0.0
        %1260 = vmatpush.msra.mxu0 %v1243
        %1261 = vmatpush.msra.mxu0 %v1242
        %1262 = vmatpush.msra.mxu0 %v1241
        %1263 = vmatpush.msra.mxu0 %v1240
        %1264 = vmatpush.msra.mxu0 %v1239
        %1265 = vmatpush.msra.mxu0 %v1238
        %1266 = vmatpush.msra.mxu0 %v1237
        %1267 = vmatpush.msra.mxu0 %v1236
        %1268 = vmatmul.f32.gmra.mxu0 %v1250
        %v1269 = vpop.f32.mrf.mxu0
        %v1270 = vadd.f32 %v1246, %v1269
        %1271 = vdwg.mxu0
        %v1272 = vadd.f32 %v1203, %v1270
        %v1273 = vsel %vm410, %v1272, 0.0
        %1274 = vadd.xlane.f32.xlu0 %v1273
        %v1275 = vpop.xlane.xlu0 %1274
        %v1276 = vmul.f32 %v1275, %v770
        %v1277 = vsub.f32 %v1272, %v1276
        %v1278 = vmul.f32 %v1277, %v1277
        %v1279 = vsel %vm410, %v1278, 0.0
        %1280 = vadd.xlane.f32.xlu0 %v1279
        %v1281 = vpop.xlane.xlu0 %1280
        %v1282 = vmul.f32 %v1281, %v770
        %v1283 = vadd.f32 %v1282, 1e-05
        %v1284 = vrsqrt.pop %v1283
        %v1285 = vmul.f32 %v1284, %v1283
        %v1286 = vmul.f32 %v1285, %v1284
        %v1287 = vmul.f32 0.5, %v1286
        %v1288 = vsub.f32 1.5, %v1287
        %v1289 = vmul.f32 %v1284, %v1288
        %vm1290 = vweird.f32 %v1283
        %vm1291 = vweird.f32 %v1284
        %vm1292 = vmor %vm1290, %vm1291
        %v1293 = vsel %vm1292, %v1284, %v1289
        %v1294 = vmul.f32 %v1277, %v1293
        %v1295 = vperm.slane %v401, 4
        %v1296 = vmul.f32 %v1294, %v1295
        %v1297 = vperm.slane %v401, 5
        %v1298 = vadd.f32 %v1296, %v1297
        %1299 = vst.msk [vmem:[%s390] sm:$0xff] %vm410, %v1298
        %s1300 = sand.u32 %s274, 1
        %s1301 = scalar_lea.sflag [#allocation4], %s1300
        %s1302 = sand.u32 %s274, 1
        %s1303 = smul.addr %s1302, 8
        %s1304 = scalar_lea.vmem [#allocation3], %s1303
        // Predicated region
        $region65: #{decoder_layer.1} parent=63 // pred_check
          %p1305 = pneg %p284
        $region66: #{decoder_layer.1} parent=63 // pred_check_branch
          %1307 = sbr.rel (%p1305) target = $region68
        $region67: #{decoder_layer.1} parent=63 // pred_region
          %1309 = vsyncadd %s1301, 0
          %s1310 = smul.addr %s25, 8
          %s1311 = scalar_lea.hbm %s11, %s1310
          %s1313 = sshll.u32 %s1304, 4
          %s1314 = int_to_ptr.vmem [resolvable:$true] %s1313
          %s1315 = sshll.u32 %s1311, 4
          %s1316 = int_to_ptr.hbm [resolvable:$true] %s1315
          %1318 = dma.vmem_to_hbm [thread:$0]  %s1314, 128, %s1316, %s1301
        $region68: #{decoder_layer.1} parent=63 // pred_fallthru
          _
      $region64: #{decoder_layer.1} parent=5 // pred_fallthru
        _
      %p1319 = scmp.le.s32.totalorder 2, %s20
      // Predicated region
      $region69: #{decoder_layer.1} parent=5 // pred_check
        %p1320 = pneg %p1319
      $region70: #{decoder_layer.1} parent=5 // pred_check_branch
        %1322 = sbr.rel (%p1320) target = $region72
      $region71: #{decoder_layer.1} parent=5 // pred_region
        %s1323 = ssub.s32 %s20, 2
        // Predicated region
        $region73: #{decoder_layer.1} parent=71 // pred_check
          %p1324 = pneg %p290
        $region74: #{decoder_layer.1} parent=71 // pred_check_branch
          %1326 = sbr.rel (%p1324) target = $region76
        $region75: #{decoder_layer.1} parent=71 // pred_region
          %s1327 = sand.u32 %s275, 1
          %s1328 = scalar_lea.sflag [#allocation4], %s1327
          %s1329 = sand.u32 %s275, 1
          %s1330 = smul.addr %s1329, 8
          %s1331 = scalar_lea.vmem [#allocation3], %s1330
          %1333 = dma.done %s1328, 128
        $region76: #{decoder_layer.1} parent=71 // pred_fallthru
          _
      $region72: #{decoder_layer.1} parent=5 // pred_fallthru
        _
    $region6: #{decoder_layer.1} parent=1 // loop_footer
      %s24 = sadd.s32 1, %s20
    $region7: #{decoder_layer.1} parent=1 // loop_footer_branch
      %19 = sbr.rel target = $region3
    $region8: #{decoder_layer.1} parent=1 // loop_exit
      _
    %1334 = vsyncpa [#allocation4], 1
    %s1335 = scalar_lea.sflag [#allocation4], 1
    %1336 = vsyncpa %s1335, 1

</llo_original>
